<compile_context>
chip_gen: v6e
topology: v6e:2x2x1
jax: 0.10.0
libtpu: 0.0.40
codegen_flags: <defaults>
</compile_context>

<pallas_src>
import functools

import jax
import jax.numpy as jnp
from jax.experimental import pallas as pl
from jax.experimental.pallas import tpu as pltpu

EPS = 1e-6
_MiB = 1 << 20


def _clamp_vmem(nbytes):
    # Generous floor (safe vs. every chip's scoped default), ceiling kept below
    # v7x's 64 MiB physical VMEM.
    return int(min(max(nbytes, 32 * _MiB), 56 * _MiB))


# ----------------------------------------------------------------------------
# Kernel 1: depthwise conv2d (kernel K, padding K//2, groups=C) + residual add
# ----------------------------------------------------------------------------
def dwconv_residual_kernel(x_ref, w_ref, b_ref, out_ref, xpad_ref, *, K):
    # x_ref:    (1, H, W, C)          UNPADDED activation tile (channel-last)
    # w_ref:    (K*K, C)              depthwise taps, tap index = dy*K + dx
    # b_ref:    (1, C)                bias
    # xpad_ref: (1, H+K-1, W+K-1, C)  VMEM scratch; zero halo built in-kernel
    _, H, W, C = out_ref.shape
    pad = K // 2

    # Zero the halo once (scratch persists across grid steps; the interior is
    # overwritten every step, borders stay zero).
    @pl.when(pl.program_id(0) == 0)
    def _():
        xpad_ref[...] = jnp.zeros_like(xpad_ref)

    x = x_ref[...].astype(jnp.float32)
    xpad_ref[:, pad:pad + H, pad:pad + W, :] = x

    w = w_ref[...].astype(jnp.float32)                        # taps loaded once
    bias = b_ref[...].astype(jnp.float32).reshape(1, 1, 1, C)
    acc = x + bias                                            # residual fused in

    # dx (sublane / W axis) outermost: K misaligned slices total instead of K*K;
    # the dy slice inside is on a leading (major) dim -> free vreg sub-select.
    # TODO(synk): on v6e/v7x the tap MACs could run in bf16 (f32 accumulator)
    # to relieve the VALU slot; v5e's VPU has no bf16 path, so keep f32 here.
    for dx in range(K):
        x_dx = xpad_ref[:, :, dx:dx + W, :]                   # (1, H+K-1, W, C)
        for dy in range(K):
            tap = w[dy * K + dx:dy * K + dx + 1, :].reshape(1, 1, 1, C)
            acc = acc + x_dx[:, dy:dy + H, :, :] * tap
    out_ref[...] = acc.astype(out_ref.dtype)


def dwconv_residual(x_nhwc, conv_w, conv_b, K, *, out_dtype=jnp.bfloat16):
    B, H, W, C = x_nhwc.shape
    assert conv_w.shape == (K * K, C), (
        "depthwise taps must be (K*K, C) channel-last (convert torch (C,1,K,K))")
    Hp, Wp = H + K - 1, W + K - 1

    in_bytes = H * W * C * x_nhwc.dtype.itemsize
    out_bytes = H * W * C * jnp.dtype(out_dtype).itemsize
    scratch_bytes = Hp * Wp * C * 4
    vmem = _clamp_vmem(2 * (in_bytes + out_bytes) + scratch_bytes + 16 * _MiB)

    # TODO(synk): at production H*W*C, additionally tile the grid over H with an
    # overlapping (tile_h + K - 1) halo so a block fits v7x's 64 MiB VMEM and a
    # B=1 input still feeds both TensorCores.
    return pl.pallas_call(
        functools.partial(dwconv_residual_kernel, K=K),
        out_shape=jax.ShapeDtypeStruct((B, H, W, C), out_dtype),
        grid=(B,),
        in_specs=[
            pl.BlockSpec((1, H, W, C), lambda b: (b, 0, 0, 0)),
            pl.BlockSpec((K * K, C), lambda b: (0, 0),
                         pipeline_mode=pl.Buffered(1)),
            pl.BlockSpec((1, C), lambda b: (0, 0),
                         pipeline_mode=pl.Buffered(1)),
        ],
        out_specs=pl.BlockSpec((1, H, W, C), lambda b: (b, 0, 0, 0)),
        scratch_shapes=[pltpu.VMEM((1, Hp, Wp, C), jnp.float32)],
        compiler_params=pltpu.CompilerParams(
            dimension_semantics=("parallel",),
            vmem_limit_bytes=vmem),
    )(x_nhwc, conv_w, conv_b)


# ----------------------------------------------------------------------------
# Kernel 2 (fused): residual + seq block (RMSNorm -> Linear -> GELU -> Linear)
#                   followed by residual + FFN block (RMSNorm -> SwiGLU MLP),
#                   all on the in-VMEM row tile.  gate/up share one weight/dot.
# ----------------------------------------------------------------------------
def fused_seq_ffn_kernel(x_ref, sg_ref, w1_ref, w2_ref, fg_ref,
                         wgu_ref, wd_ref, out_ref):
    x = x_ref[...].astype(jnp.float32)                        # (T, C), f32 resident
    # ---- residual + seq block: RMSNorm -> Linear -> GELU -> Linear ----
    var = jnp.mean(x * x, axis=-1, keepdims=True)
    xn = (x * jax.lax.rsqrt(var + EPS) * sg_ref[...]).astype(jnp.bfloat16)
    h = jnp.dot(xn, w1_ref[...], preferred_element_type=jnp.float32)
    # NOTE: tanh-approx GELU (PyTorch nn.GELU defaults to exact erf); the TTT
    # inner block is undefined in the provided source anyway, see module TODO.
    h = jax.nn.gelu(h, approximate=True)
    y = jnp.dot(h.astype(jnp.bfloat16), w2_ref[...],
                preferred_element_type=jnp.float32)
    x = x + y                                                 # residual (f32)
    # ---- residual + FFN block: RMSNorm -> SwiGLU MLP (fused gate|up dot) ----
    var = jnp.mean(x * x, axis=-1, keepdims=True)
    xn = (x * jax.lax.rsqrt(var + EPS) * fg_ref[...]).astype(jnp.bfloat16)
    gu = jnp.dot(xn, wgu_ref[...], preferred_element_type=jnp.float32)
    i2 = gu.shape[-1] // 2
    hh = (jax.nn.silu(gu[:, :i2]) * gu[:, i2:]).astype(jnp.bfloat16)
    y = jnp.dot(hh, wd_ref[...], preferred_element_type=jnp.float32)
    out_ref[...] = (x + y).astype(out_ref.dtype)              # residual (f32)


def fused_seq_ffn(x2d, seq_gamma, w1, w2, ffn_gamma, wgu, wd,
                  *, row_tile=256, out_dtype=None):
    R, C = x2d.shape
    I1 = w1.shape[1]
    I2g = wgu.shape[1]                       # = 2 * mlp_inner (gate|up concat)
    out_dtype = x2d.dtype if out_dtype is None else out_dtype

    # Prefer a tile size that divides R: avoids the jnp.pad / out[:R] HBM
    # round trips around the call.
    rt = min(row_tile, R)
    while rt > 8 and R % rt != 0:
        rt //= 2
    pad_rows = (-R) % rt
    if pad_rows:                             # rare fallback
        x2d = jnp.pad(x2d, ((0, pad_rows), (0, 0)))
    Rp = R + pad_rows
    n_tiles = Rp // rt

    w_bytes = (w1.size + w2.size + wgu.size + wd.size) * 2    # bf16, single-buffered
    act_bytes = 2 * rt * C * (x2d.dtype.itemsize + jnp.dtype(out_dtype).itemsize)
    vmem = _clamp_vmem(w_bytes + act_bytes + 16 * _MiB)

    flops = 2 * Rp * C * (2 * I1 + I2g + I2g // 2)
    transcendentals = Rp * (I1 + I2g // 2 + 2)
    bytes_accessed = (Rp * C * (x2d.dtype.itemsize + jnp.dtype(out_dtype).itemsize)
                      + w_bytes + 2 * C * 4)

    # TODO(synk): at production C/I (resident bf16 weights exceeding VMEM), add
    # an inner-dim grid axis marked "arbitrary" with a VMEM f32 accumulator
    # instead of keeping all weights resident.
    out = pl.pallas_call(
        fused_seq_ffn_kernel,
        out_shape=jax.ShapeDtypeStruct((Rp, C), out_dtype),
        grid=(n_tiles,),
        in_specs=[
            pl.BlockSpec((rt, C), lambda i: (i, 0)),
            pl.BlockSpec((1, C), lambda i: (0, 0)),
            pl.BlockSpec((C, I1), lambda i: (0, 0),
                         pipeline_mode=pl.Buffered(1)),
            pl.BlockSpec((I1, C), lambda i: (0, 0),
                         pipeline_mode=pl.Buffered(1)),
            pl.BlockSpec((1, C), lambda i: (0, 0)),
            pl.BlockSpec((C, I2g), lambda i: (0, 0),
                         pipeline_mode=pl.Buffered(1)),
            pl.BlockSpec((I2g // 2, C), lambda i: (0, 0),
                         pipeline_mode=pl.Buffered(1)),
        ],
        out_specs=pl.BlockSpec((rt, C), lambda i: (i, 0)),
        compiler_params=pltpu.CompilerParams(
            dimension_semantics=("parallel",),
            vmem_limit_bytes=vmem),
        cost_estimate=pl.CostEstimate(flops=flops,
                                      transcendentals=transcendentals,
                                      bytes_accessed=bytes_accessed),
    )(x2d, seq_gamma, w1, w2, ffn_gamma, wgu, wd)
    return out[:R] if pad_rows else out


# ----------------------------------------------------------------------------
# Block2D forward (glue in plain JAX, hot paths in Pallas)
# ----------------------------------------------------------------------------
def block2d_forward(hidden_states, params, *, conv_kernel, pre_conv=True,
                    row_tile=256):
    B, N, C = hidden_states.shape
    H = W = int(round(N ** 0.5))
    assert H * W == N, "sequence length must be a perfect square (H == W grid)"

    x = hidden_states
    if pre_conv:
        # (B,N,C) <-> (B,H,W,C) reshapes are layout-free (channel-last, row-major).
        # Handoff to the fused kernel in bf16 (halves inter-kernel HBM traffic);
        # conv math and residual are computed in f32 inside the kernel.
        x = dwconv_residual(x.reshape(B, H, W, C), params["conv_w"],
                            params["conv_b"], conv_kernel,
                            out_dtype=jnp.bfloat16).reshape(B, N, C)

    # Fused: residual+seq block and residual+SwiGLU FFN in one pallas_call so
    # the activation never round-trips HBM between the two sub-blocks.
    x2d = fused_seq_ffn(x.reshape(B * N, C),
                        params["seq_norm_w"], params["ttt_w1"], params["ttt_w2"],
                        params["ffn_norm_w"], params["mlp_gate_up"],
                        params["mlp_down"],
                        row_tile=row_tile, out_dtype=hidden_states.dtype)
    return x2d.reshape(B, N, C)


def init_params(key, hidden_size, conv_kernel, ttt_inner, mlp_inner):
    ks = jax.random.split(key, 8)
    C, K = hidden_size, conv_kernel

    def bf16_w(k, shape):
        return (0.02 * jax.random.normal(k, shape, jnp.float32)).astype(jnp.bfloat16)

    return {
        "conv_w": 0.1 * jax.random.normal(ks[0], (K * K, C), jnp.float32),
        "conv_b": 0.1 * jax.random.normal(ks[1], (1, C), jnp.float32),
        "seq_norm_w": jnp.ones((1, C), jnp.float32),
        "ttt_w1": bf16_w(ks[2], (C, ttt_inner)),
        "ttt_w2": bf16_w(ks[3], (ttt_inner, C)),
        "ffn_norm_w": jnp.ones((1, C), jnp.float32),
        # gate and up projections concatenated along the output (lane) axis
        "mlp_gate_up": bf16_w(ks[4], (C, 2 * mlp_inner)),
        "mlp_down": bf16_w(ks[5], (mlp_inner, C)),
    }


if __name__ == "__main__":
    B, H, W, C = 2, 16, 16, 128        # batch, spatial, hidden_size (lane-dense C)
    N = H * W                          # sequence length (perfect square)
    conv_kernel = 3
    ttt_inner = 2 * C                  # inner width of TTT-MLP path (mult. of 128)
    mlp_inner = 2 * C                  # SwiGLU intermediate size (mult. of 128)

    key = jax.random.PRNGKey(0)
    k_in, k_par = jax.random.split(key)
    hidden_states = jax.random.normal(k_in, (B, N, C), jnp.float32)
    params = init_params(k_par, C, conv_kernel, ttt_inner, mlp_inner)

    # R = B*N = 512 -> row_tile=256 gives 2 parallel tiles (both v7x TCs busy,
    # 256-row M fill on the v6e/v7x MXU); on v5e/v6e row_tile=512 also works.
    out = block2d_forward(hidden_states, params, conv_kernel=conv_kernel,
                          pre_conv=True, row_tile=256)
    out = jax.block_until_ready(out)
    assert out.shape == (B, N, C) and out.dtype == jnp.float32
    assert bool(jnp.all(jnp.isfinite(out)))
    print("KERNEL_OK")
</pallas_src>

<mosaic_0001>
module attributes {stable_mosaic.version = 11 : i64} {
  func.func @dwconv_residual_kernel(%arg0: i32, %arg1: memref<1x16x16x128xf32, #tpu.memory_space<vmem>>, %arg2: memref<9x128xf32, #tpu.memory_space<vmem>>, %arg3: memref<1x128xf32, #tpu.memory_space<vmem>>, %arg4: memref<1x16x16x128xbf16, #tpu.memory_space<vmem>>, %arg5: memref<1x18x18x128xf32, #tpu.memory_space<vmem>>) attributes {dimension_semantics = [#tpu.dimension_semantics<parallel>], iteration_bounds = array<i64: 2>, scalar_prefetch = 0 : i64, scratch_operands = 1 : i64, tpu.core_type = #tpu.core_type<tc>, window_params = [{transform_indices = @transform_0, window_bounds = array<i64: 1, 16, 16, 128>}, {pipeline_mode = #tpu.pipeline_mode<synchronous>, transform_indices = @transform_1, window_bounds = array<i64: 9, 128>}, {pipeline_mode = #tpu.pipeline_mode<synchronous>, transform_indices = @transform_2, window_bounds = array<i64: 1, 128>}, {transform_indices = @transform_3, window_bounds = array<i64: 1, 16, 16, 128>}]} {
    %c0_i32 = arith.constant 0 : i32
    %0 = arith.cmpi eq, %arg0, %c0_i32 : i32
    %1 = arith.extui %0 : i1 to i32
    %c0_i32_0 = arith.constant 0 : i32
    %2 = arith.cmpi ne, %1, %c0_i32_0 : i32
    scf.if %2 {
      %cst = arith.constant 0.000000e+00 : f32
      %69 = vector.broadcast %cst : f32 to vector<1x18x18x128xf32>
      %c0_26 = arith.constant 0 : index
      %c0_27 = arith.constant 0 : index
      %c0_28 = arith.constant 0 : index
      %c0_29 = arith.constant 0 : index
      %70 = vector.load %arg5[%c0_26, %c0_27, %c0_28, %c0_29] : memref<1x18x18x128xf32, #tpu.memory_space<vmem>>, vector<1x18x18x128xf32>
      tpu.vector_store %arg5[%c0_26, %c0_27, %c0_28, %c0_29], %69 {strides = array<i32>} : memref<1x18x18x128xf32, #tpu.memory_space<vmem>>, vector<1x18x18x128xf32>,
    } else {
    }
    %c0 = arith.constant 0 : index
    %c0_1 = arith.constant 0 : index
    %c0_2 = arith.constant 0 : index
    %c0_3 = arith.constant 0 : index
    %3 = vector.load %arg1[%c0, %c0_1, %c0_2, %c0_3] : memref<1x16x16x128xf32, #tpu.memory_space<vmem>>, vector<1x16x16x128xf32>
    %c0_4 = arith.constant 0 : index
    %c1 = arith.constant 1 : index
    %c1_5 = arith.constant 1 : index
    %c0_6 = arith.constant 0 : index
    %4 = vector.load %arg5[%c0_4, %c1, %c1_5, %c0_6] : memref<1x18x18x128xf32, #tpu.memory_space<vmem>>, vector<1x16x16x128xf32>
    tpu.vector_store %arg5[%c0_4, %c1, %c1_5, %c0_6], %3 {strides = array<i32>} : memref<1x18x18x128xf32, #tpu.memory_space<vmem>>, vector<1x16x16x128xf32>,
    %c0_7 = arith.constant 0 : index
    %c0_8 = arith.constant 0 : index
    %5 = vector.load %arg2[%c0_7, %c0_8] : memref<9x128xf32, #tpu.memory_space<vmem>>, vector<9x128xf32>
    %c0_9 = arith.constant 0 : index
    %c0_10 = arith.constant 0 : index
    %6 = vector.load %arg3[%c0_9, %c0_10] : memref<1x128xf32, #tpu.memory_space<vmem>>, vector<1x128xf32>
    %7 = vector.shape_cast %6 : vector<1x128xf32> to vector<1x1x1x128xf32>
    %8 = vector.broadcast %7 : vector<1x1x1x128xf32> to vector<1x16x16x128xf32>
    %9 = arith.addf %3, %8 : vector<1x16x16x128xf32>
    %c0_11 = arith.constant 0 : index
    %c0_12 = arith.constant 0 : index
    %c0_13 = arith.constant 0 : index
    %c0_14 = arith.constant 0 : index
    %10 = vector.load %arg5[%c0_11, %c0_12, %c0_13, %c0_14] : memref<1x18x18x128xf32, #tpu.memory_space<vmem>>, vector<1x18x16x128xf32>
    %11 = vector.extract_strided_slice %5 {offsets = [0, 0], sizes = [1, 128], strides = [1, 1]} : vector<9x128xf32> to vector<1x128xf32>
    %12 = vector.shape_cast %11 : vector<1x128xf32> to vector<1x1x1x128xf32>
    %13 = vector.extract_strided_slice %10 {offsets = [0, 0, 0, 0], sizes = [1, 16, 16, 128], strides = [1, 1, 1, 1]} : vector<1x18x16x128xf32> to vector<1x16x16x128xf32>
    %14 = vector.broadcast %12 : vector<1x1x1x128xf32> to vector<1x16x16x128xf32>
    %15 = arith.mulf %13, %14 : vector<1x16x16x128xf32>
    %16 = arith.addf %9, %15 : vector<1x16x16x128xf32>
    %17 = vector.extract_strided_slice %5 {offsets = [3, 0], sizes = [1, 128], strides = [1, 1]} : vector<9x128xf32> to vector<1x128xf32>
    %18 = vector.shape_cast %17 : vector<1x128xf32> to vector<1x1x1x128xf32>
    %19 = vector.extract_strided_slice %10 {offsets = [0, 1, 0, 0], sizes = [1, 16, 16, 128], strides = [1, 1, 1, 1]} : vector<1x18x16x128xf32> to vector<1x16x16x128xf32>
    %20 = vector.broadcast %18 : vector<1x1x1x128xf32> to vector<1x16x16x128xf32>
    %21 = arith.mulf %19, %20 : vector<1x16x16x128xf32>
    %22 = arith.addf %16, %21 : vector<1x16x16x128xf32>
    %23 = vector.extract_strided_slice %5 {offsets = [6, 0], sizes = [1, 128], strides = [1, 1]} : vector<9x128xf32> to vector<1x128xf32>
    %24 = vector.shape_cast %23 : vector<1x128xf32> to vector<1x1x1x128xf32>
    %25 = vector.extract_strided_slice %10 {offsets = [0, 2, 0, 0], sizes = [1, 16, 16, 128], strides = [1, 1, 1, 1]} : vector<1x18x16x128xf32> to vector<1x16x16x128xf32>
    %26 = vector.broadcast %24 : vector<1x1x1x128xf32> to vector<1x16x16x128xf32>
    %27 = arith.mulf %25, %26 : vector<1x16x16x128xf32>
    %28 = arith.addf %22, %27 : vector<1x16x16x128xf32>
    %c0_15 = arith.constant 0 : index
    %c0_16 = arith.constant 0 : index
    %c1_17 = arith.constant 1 : index
    %c0_18 = arith.constant 0 : index
    %29 = vector.load %arg5[%c0_15, %c0_16, %c1_17, %c0_18] : memref<1x18x18x128xf32, #tpu.memory_space<vmem>>, vector<1x18x16x128xf32>
    %30 = vector.extract_strided_slice %5 {offsets = [1, 0], sizes = [1, 128], strides = [1, 1]} : vector<9x128xf32> to vector<1x128xf32>
    %31 = vector.shape_cast %30 : vector<1x128xf32> to vector<1x1x1x128xf32>
    %32 = vector.extract_strided_slice %29 {offsets = [0, 0, 0, 0], sizes = [1, 16, 16, 128], strides = [1, 1, 1, 1]} : vector<1x18x16x128xf32> to vector<1x16x16x128xf32>
    %33 = vector.broadcast %31 : vector<1x1x1x128xf32> to vector<1x16x16x128xf32>
    %34 = arith.mulf %32, %33 : vector<1x16x16x128xf32>
    %35 = arith.addf %28, %34 : vector<1x16x16x128xf32>
    %36 = vector.extract_strided_slice %5 {offsets = [4, 0], sizes = [1, 128], strides = [1, 1]} : vector<9x128xf32> to vector<1x128xf32>
    %37 = vector.shape_cast %36 : vector<1x128xf32> to vector<1x1x1x128xf32>
    %38 = vector.extract_strided_slice %29 {offsets = [0, 1, 0, 0], sizes = [1, 16, 16, 128], strides = [1, 1, 1, 1]} : vector<1x18x16x128xf32> to vector<1x16x16x128xf32>
    %39 = vector.broadcast %37 : vector<1x1x1x128xf32> to vector<1x16x16x128xf32>
    %40 = arith.mulf %38, %39 : vector<1x16x16x128xf32>
    %41 = arith.addf %35, %40 : vector<1x16x16x128xf32>
    %42 = vector.extract_strided_slice %5 {offsets = [7, 0], sizes = [1, 128], strides = [1, 1]} : vector<9x128xf32> to vector<1x128xf32>
    %43 = vector.shape_cast %42 : vector<1x128xf32> to vector<1x1x1x128xf32>
    %44 = vector.extract_strided_slice %29 {offsets = [0, 2, 0, 0], sizes = [1, 16, 16, 128], strides = [1, 1, 1, 1]} : vector<1x18x16x128xf32> to vector<1x16x16x128xf32>
    %45 = vector.broadcast %43 : vector<1x1x1x128xf32> to vector<1x16x16x128xf32>
    %46 = arith.mulf %44, %45 : vector<1x16x16x128xf32>
    %47 = arith.addf %41, %46 : vector<1x16x16x128xf32>
    %c0_19 = arith.constant 0 : index
    %c0_20 = arith.constant 0 : index
    %c2 = arith.constant 2 : index
    %c0_21 = arith.constant 0 : index
    %48 = vector.load %arg5[%c0_19, %c0_20, %c2, %c0_21] : memref<1x18x18x128xf32, #tpu.memory_space<vmem>>, vector<1x18x16x128xf32>
    %49 = vector.extract_strided_slice %5 {offsets = [2, 0], sizes = [1, 128], strides = [1, 1]} : vector<9x128xf32> to vector<1x128xf32>
    %50 = vector.shape_cast %49 : vector<1x128xf32> to vector<1x1x1x128xf32>
    %51 = vector.extract_strided_slice %48 {offsets = [0, 0, 0, 0], sizes = [1, 16, 16, 128], strides = [1, 1, 1, 1]} : vector<1x18x16x128xf32> to vector<1x16x16x128xf32>
    %52 = vector.broadcast %50 : vector<1x1x1x128xf32> to vector<1x16x16x128xf32>
    %53 = arith.mulf %51, %52 : vector<1x16x16x128xf32>
    %54 = arith.addf %47, %53 : vector<1x16x16x128xf32>
    %55 = vector.extract_strided_slice %5 {offsets = [5, 0], sizes = [1, 128], strides = [1, 1]} : vector<9x128xf32> to vector<1x128xf32>
    %56 = vector.shape_cast %55 : vector<1x128xf32> to vector<1x1x1x128xf32>
    %57 = vector.extract_strided_slice %48 {offsets = [0, 1, 0, 0], sizes = [1, 16, 16, 128], strides = [1, 1, 1, 1]} : vector<1x18x16x128xf32> to vector<1x16x16x128xf32>
    %58 = vector.broadcast %56 : vector<1x1x1x128xf32> to vector<1x16x16x128xf32>
    %59 = arith.mulf %57, %58 : vector<1x16x16x128xf32>
    %60 = arith.addf %54, %59 : vector<1x16x16x128xf32>
    %61 = vector.extract_strided_slice %5 {offsets = [8, 0], sizes = [1, 128], strides = [1, 1]} : vector<9x128xf32> to vector<1x128xf32>
    %62 = vector.shape_cast %61 : vector<1x128xf32> to vector<1x1x1x128xf32>
    %63 = vector.extract_strided_slice %48 {offsets = [0, 2, 0, 0], sizes = [1, 16, 16, 128], strides = [1, 1, 1, 1]} : vector<1x18x16x128xf32> to vector<1x16x16x128xf32>
    %64 = vector.broadcast %62 : vector<1x1x1x128xf32> to vector<1x16x16x128xf32>
    %65 = arith.mulf %63, %64 : vector<1x16x16x128xf32>
    %66 = arith.addf %60, %65 : vector<1x16x16x128xf32>
    %67 = arith.truncf %66 : vector<1x16x16x128xf32> to vector<1x16x16x128xbf16>
    %c0_22 = arith.constant 0 : index
    %c0_23 = arith.constant 0 : index
    %c0_24 = arith.constant 0 : index
    %c0_25 = arith.constant 0 : index
    %68 = vector.load %arg4[%c0_22, %c0_23, %c0_24, %c0_25] : memref<1x16x16x128xbf16, #tpu.memory_space<vmem>>, vector<1x16x16x128xbf16>
    tpu.vector_store %arg4[%c0_22, %c0_23, %c0_24, %c0_25], %67 {strides = array<i32>} : memref<1x16x16x128xbf16, #tpu.memory_space<vmem>>, vector<1x16x16x128xbf16>,
    return
  }
  func.func @transform_0(%arg0: i32) -> (i32, i32, i32, i32) {
    %c0_i32 = arith.constant 0 : i32
    %c0_i32_0 = arith.constant 0 : i32
    %c0_i32_1 = arith.constant 0 : i32
    %c0_i32_2 = arith.constant 0 : i32
    return %arg0, %c0_i32, %c0_i32_0, %c0_i32_1 : i32, i32, i32, i32
  }
  func.func @transform_1(%arg0: i32) -> (i32, i32) {
    %c0_i32 = arith.constant 0 : i32
    %c0_i32_0 = arith.constant 0 : i32
    %c0_i32_1 = arith.constant 0 : i32
    return %c0_i32, %c0_i32_0 : i32, i32
  }
  func.func @transform_2(%arg0: i32) -> (i32, i32) {
    %c0_i32 = arith.constant 0 : i32
    %c0_i32_0 = arith.constant 0 : i32
    %c0_i32_1 = arith.constant 0 : i32
    return %c0_i32, %c0_i32_0 : i32, i32
  }
  func.func @transform_3(%arg0: i32) -> (i32, i32, i32, i32) {
    %c0_i32 = arith.constant 0 : i32
    %c0_i32_0 = arith.constant 0 : i32
    %c0_i32_1 = arith.constant 0 : i32
    %c0_i32_2 = arith.constant 0 : i32
    return %arg0, %c0_i32, %c0_i32_0, %c0_i32_1 : i32, i32, i32, i32
  }
}

</mosaic_0001>

<llo_original>
// kernel: tpu_custom_call.1
$region0: #{tpu_custom_call.1}
  #allocation0 [shape = 'u32[]', space=smem, size = 0x4, offset = 0x4, fixed_abs, tag = 'smem constant byte address 0x4 - core index']
  #allocation1 [shape = 'u32[144,128]{1,0:T(1,128)}', space=vmem, size = 0x12000, scoped, tag = 'internal scratch']
  #allocation2 [shape = 'f32[1,18,18,128]{3,2,1,0:T(8,128)}', space=vmem, size = 0x36000, scoped, tag = 'scratch operand']
  %s0 = inlined_call_operand.hbm [shape: f32[2,16,16,128], index: 0, kind: input, shape index: {}]
  %s1 = inlined_call_operand.hbm [shape: f32[9,128], index: 1, kind: input, shape index: {}]
  %s2 = inlined_call_operand.vmem [shape: f32[1,128], index: 2, kind: input, shape index: {}]
  %s3 = inlined_call_operand.hbm [shape: bf16[2,16,16,128], index: 3, kind: output, shape index: {}]
  %s4 = sld [smem:[#allocation0]]
  $region57: #{tpu_custom_call.1} parent=0
    _
  %s6 = ssub.s32 1, %s4
  %s7 = scalar_select 0, %s6, %s4
  $region1: #{tpu_custom_call.1} parent=0
    #allocation3 [shape = 'u8[262144]{0}', space=vmem, size = 0x40000, scoped, tag = 'input window, operand 0']
    #allocation4 [shape = 's32[2]{0}', space=sflag, size = 0x8, scoped, tag = 'scoped memory for tpu_custom_call.1']
    #allocation5 [shape = 's32[2]{0}', space=sflag, size = 0x8, scoped, tag = 'scoped memory for tpu_custom_call.1']
    #allocation6 [shape = 'u8[8192]{0}', space=vmem, size = 0x2000, scoped, tag = 'input window, operand 1, single buffered']
    #allocation7 [shape = 's32[1]{0}', space=sflag, size = 0x4, scoped, tag = 'scoped memory for tpu_custom_call.1']
    #allocation8 [shape = 'u8[131072]{0}', space=vmem, size = 0x20000, scoped, tag = 'output window, operand 0']
    %8 = vsyncpa [#allocation4], 0
    %s9 = scalar_lea.sflag [#allocation4], 1
    %10 = vsyncpa %s9, 0
    %11 = vsyncpa [#allocation7], 0
    %12 = vsyncpa [#allocation5], 0
    %s13 = scalar_lea.sflag [#allocation5], 1
    %14 = vsyncpa %s13, 0
    loop: start=0, step=1, limit=4
    $region2: #{tpu_custom_call.1} parent=1 // loop_pre_header
      _
    $region3: #{tpu_custom_call.1} parent=1 // loop_header
      %s16 = sphi 0, %s20
      %p17 = scmp.ge.s32.totalorder %s16, 4
      %s26 = sphi 0, %s28
      %s29 = sphi 0, %s26
      %s30 = sphi 0, %s29
      %s46 = sphi 0, %s30
      %s50 = sphi 0, %s50
      %s52 = sphi 0, %s50
      %s53 = sphi 0, %s52
      %s67 = sphi 0, %s53
      %s71 = sphi 0, %s71
      %s73 = sphi 0, %s71
      %s74 = sphi 0, %s73
      %s88 = sphi 0, %s74
      %s94 = sphi 0, %s96
      %s97 = sphi 0, %s94
      %s98 = sphi 0, %s97
      %s114 = sphi 0, %s98
    $region4: #{tpu_custom_call.1} parent=1 // loop_header_branch
      %19 = sbr.rel (%p17) target = $region8
    $region5: #{tpu_custom_call.1} parent=1 // loop_body
      %s21 = ssub.s32 %s16, 1
      %s22 = ssub.s32 %s16, 2
      %s23 = sadd.s32 %s16, 1
      %s24 = ssub.s32 %s16, %s23
      %p25 = scmp.eq.s32.totalorder %s24, 0
      %s27 = sadd.s32 %s26, 1
      %s28 = scalar_select %p25, %s26, %s27
      %p31 = pneg %p25
      %p32 = scmp.eq.s32.totalorder %s16, 1
      %p33 = por %p31, %p32
      %p34 = scmp.ne.s32.totalorder %s26, %s29
      %p35 = scmp.eq.s32.totalorder %s16, 0
      %p36 = por %p34, %p35
      %p37 = scmp.ne.s32.totalorder %s26, %s29
      %p38 = scmp.eq.s32.totalorder %s21, 1
      %p39 = por %p37, %p38
      %p40 = scmp.ne.s32.totalorder %s29, %s30
      %p41 = scmp.eq.s32.totalorder %s21, 0
      %p42 = por %p40, %p41
      %p43 = scmp.ne.s32.totalorder %s29, %s30
      %p44 = scmp.eq.s32.totalorder %s22, 1
      %p45 = por %p43, %p44
      %p47 = scmp.ne.s32.totalorder %s30, %s46
      %p48 = scmp.eq.s32.totalorder %s22, 0
      %p49 = por %p47, %p48
      %s51 = sadd.s32 %s50, 1
      %p54 = scmp.eq.s32.totalorder %s16, 1
      %p55 = scmp.ne.s32.totalorder %s50, %s52
      %p56 = scmp.eq.s32.totalorder %s16, 0
      %p57 = por %p55, %p56
      %p58 = scmp.ne.s32.totalorder %s50, %s52
      %p59 = scmp.eq.s32.totalorder %s21, 1
      %p60 = por %p58, %p59
      %p61 = scmp.ne.s32.totalorder %s52, %s53
      %p62 = scmp.eq.s32.totalorder %s21, 0
      %p63 = por %p61, %p62
      %p64 = scmp.ne.s32.totalorder %s52, %s53
      %p65 = scmp.eq.s32.totalorder %s22, 1
      %p66 = por %p64, %p65
      %p68 = scmp.ne.s32.totalorder %s53, %s67
      %p69 = scmp.eq.s32.totalorder %s22, 0
      %p70 = por %p68, %p69
      %s72 = sadd.s32 %s71, 1
      %p75 = scmp.eq.s32.totalorder %s16, 1
      %p76 = scmp.ne.s32.totalorder %s71, %s73
      %p77 = scmp.eq.s32.totalorder %s16, 0
      %p78 = por %p76, %p77
      %p79 = scmp.ne.s32.totalorder %s71, %s73
      %p80 = scmp.eq.s32.totalorder %s21, 1
      %p81 = por %p79, %p80
      %p82 = scmp.ne.s32.totalorder %s73, %s74
      %p83 = scmp.eq.s32.totalorder %s21, 0
      %p84 = por %p82, %p83
      %p85 = scmp.ne.s32.totalorder %s73, %s74
      %p86 = scmp.eq.s32.totalorder %s22, 1
      %p87 = por %p85, %p86
      %p89 = scmp.ne.s32.totalorder %s74, %s88
      %p90 = scmp.eq.s32.totalorder %s22, 0
      %p91 = por %p89, %p90
      %s92 = ssub.s32 %s16, %s23
      %p93 = scmp.eq.s32.totalorder %s92, 0
      %s95 = sadd.s32 %s94, 1
      %s96 = scalar_select %p93, %s94, %s95
      %p99 = pneg %p93
      %p100 = scmp.eq.s32.totalorder %s16, 1
      %p101 = por %p99, %p100
      %p102 = scmp.ne.s32.totalorder %s94, %s97
      %p103 = scmp.eq.s32.totalorder %s16, 0
      %p104 = por %p102, %p103
      %p105 = scmp.ne.s32.totalorder %s94, %s97
      %p106 = scmp.eq.s32.totalorder %s21, 1
      %p107 = por %p105, %p106
      %p108 = scmp.ne.s32.totalorder %s97, %s98
      %p109 = scmp.eq.s32.totalorder %s21, 0
      %p110 = por %p108, %p109
      %p111 = scmp.ne.s32.totalorder %s97, %s98
      %p112 = scmp.eq.s32.totalorder %s22, 1
      %p113 = por %p111, %p112
      %p115 = scmp.ne.s32.totalorder %s98, %s114
      %p116 = scmp.eq.s32.totalorder %s22, 0
      %p117 = por %p115, %p116
      %p118 = scmp.le.s32.totalorder 1, %s16
      %p119 = scmp.lt.s32.totalorder %s16, 3
      %p120 = pnand %p118, %p119
      %p121 = pneg %p120
      // Predicated region
      $region9: #{tpu_custom_call.1} parent=5 // pred_check
        _
      $region10: #{tpu_custom_call.1} parent=5 // pred_check_branch
        %123 = sbr.rel (%p120) target = $region12
      $region11: #{tpu_custom_call.1} parent=5 // pred_region
        %s124 = ssub.s32 %s16, 1
        // Predicated region
        $region13: #{tpu_custom_call.1} parent=11 // pred_check
          %p125 = pneg %p63
        $region14: #{tpu_custom_call.1} parent=11 // pred_check_branch
          %127 = sbr.rel (%p125) target = $region16
        $region15: #{tpu_custom_call.1} parent=11 // pred_region
          %s129 = ssub.s32 256, 256
          %130 = vsyncadd [#allocation7], %s129
          %s131 = sshll.u32 [#allocation6], 4
          %s132 = int_to_ptr.vmem [resolvable:$true] %s131
          %137 = dma.hbm_to_vmem [thread:$0]  %s1, 256, %s132, [#allocation7], 128, 128, 8
        $region16: #{tpu_custom_call.1} parent=11 // pred_fallthru
          _
        // Predicated region
        $region17: #{tpu_custom_call.1} parent=11 // pred_check
          %p138 = pneg %p84
        $region18: #{tpu_custom_call.1} parent=11 // pred_check_branch
          %140 = sbr.rel (%p138) target = $region20
        $region19: #{tpu_custom_call.1} parent=11 // pred_region
          _
        $region20: #{tpu_custom_call.1} parent=11 // pred_fallthru
          _
      $region12: #{tpu_custom_call.1} parent=5 // pred_fallthru
        _
      %p141 = scmp.lt.s32.totalorder %s16, 2
      // Predicated region
      $region21: #{tpu_custom_call.1} parent=5 // pred_check
        %p142 = pneg %p141
      $region22: #{tpu_custom_call.1} parent=5 // pred_check_branch
        %144 = sbr.rel (%p142) target = $region24
      $region23: #{tpu_custom_call.1} parent=5 // pred_region
        // Predicated region
        $region25: #{tpu_custom_call.1} parent=23 // pred_check
          %p145 = pneg %p36
        $region26: #{tpu_custom_call.1} parent=23 // pred_check_branch
          %147 = sbr.rel (%p145) target = $region28
        $region27: #{tpu_custom_call.1} parent=23 // pred_region
          %s148 = sand.u32 %s26, 1
          %s149 = scalar_lea.sflag [#allocation4], %s148
          %s150 = sand.u32 %s26, 1
          %s151 = smul.addr %s150, 256
          %s152 = scalar_lea.vmem [#allocation3], %s151
          %s154 = ssub.s32 4096, 4096
          %155 = vsyncadd %s149, %s154
          %s156 = smul.addr %s16, 32
          %s157 = smul.addr %s156, 128
          %s158 = scalar_lea.hbm %s0, %s157
          %s159 = sshll.u32 %s152, 4
          %s160 = int_to_ptr.vmem [resolvable:$true] %s159
          %165 = dma.hbm_to_vmem [thread:$0]  %s158, 4096, %s160, %s149, 128, 128, 8
        $region28: #{tpu_custom_call.1} parent=23 // pred_fallthru
          _
      $region24: #{tpu_custom_call.1} parent=5 // pred_fallthru
        _
      %p166 = scmp.le.s32.totalorder 1, %s16
      %p167 = scmp.lt.s32.totalorder %s16, 3
      %p168 = pnand %p166, %p167
      %p169 = pneg %p168
      // Predicated region
      $region29: #{tpu_custom_call.1} parent=5 // pred_check
        _
      $region30: #{tpu_custom_call.1} parent=5 // pred_check_branch
        %171 = sbr.rel (%p168) target = $region32
      $region31: #{tpu_custom_call.1} parent=5 // pred_region
        %s172 = ssub.s32 %s16, 1
        %s173 = sand.u32 %s29, 1
        %s174 = scalar_lea.sflag [#allocation4], %s173
        %s175 = sand.u32 %s29, 1
        %s176 = smul.addr %s175, 256
        %s177 = scalar_lea.vmem [#allocation3], %s176
        // Predicated region
        $region33: #{tpu_custom_call.1} parent=31 // pred_check
          %p178 = pneg %p42
        $region34: #{tpu_custom_call.1} parent=31 // pred_check_branch
          %180 = sbr.rel (%p178) target = $region36
        $region35: #{tpu_custom_call.1} parent=31 // pred_region
          %181 = dma.done %s174, 4096
        $region36: #{tpu_custom_call.1} parent=31 // pred_fallthru
          _
        // Predicated region
        $region37: #{tpu_custom_call.1} parent=31 // pred_check
          %p182 = pneg %p63
        $region38: #{tpu_custom_call.1} parent=31 // pred_check_branch
          %184 = sbr.rel (%p182) target = $region40
        $region39: #{tpu_custom_call.1} parent=31 // pred_region
          %185 = dma.done [#allocation7], 256
        $region40: #{tpu_custom_call.1} parent=31 // pred_fallthru
          _
        %s186 = sand.u32 %s29, 1
        %s187 = scalar_lea.sflag [#allocation4], %s186
        %s188 = sand.u32 %s29, 1
        %s189 = smul.addr %s188, 256
        %s190 = scalar_lea.vmem [#allocation3], %s189
        %p191 = pneg %p42
        %p192 = pneg %p39
        %p193 = pneg %p63
        %p194 = pneg %p60
        %p195 = pneg %p84
        %p196 = pneg %p81
        %p197 = pneg %p110
        %p198 = pneg %p107
        %s199 = sand.u32 %s97, 1
        %s200 = scalar_lea.sflag [#allocation5], %s199
        %s201 = sand.u32 %s97, 1
        %s202 = smul.addr %s201, 128
        %s203 = scalar_lea.vmem [#allocation8], %s202
        %p204 = scmp.eq.s32.totalorder %s21, 0
        // Predicated region
        $region41: #{tpu_custom_call.1} parent=31 // pred_check
          %p205 = pneg %p204
        $region42: #{tpu_custom_call.1} parent=31 // pred_check_branch
          %207 = sbr.rel (%p205) target = $region44
        $region43: #{tpu_custom_call.1} parent=31 // pred_region
          %208 = vst [vmem:[#allocation2] sm:$0xff] 0.0
          %209 = vst [vmem:[#allocation2 + $0x8] sm:$0xff] 0.0
          %210 = vst [vmem:[#allocation2 + $0x10] sm:$0x3] 0.0
          %211 = vst [vmem:[#allocation2 + $0x18] sm:$0xff] 0.0
          %212 = vst [vmem:[#allocation2 + $0x20] sm:$0xff] 0.0
          %213 = vst [vmem:[#allocation2 + $0x28] sm:$0x3] 0.0
          %214 = vst [vmem:[#allocation2 + $0x30] sm:$0xff] 0.0
          %215 = vst [vmem:[#allocation2 + $0x38] sm:$0xff] 0.0
          %216 = vst [vmem:[#allocation2 + $0x40] sm:$0x3] 0.0
          %217 = vst [vmem:[#allocation2 + $0x48] sm:$0xff] 0.0
          %218 = vst [vmem:[#allocation2 + $0x50] sm:$0xff] 0.0
          %219 = vst [vmem:[#allocation2 + $0x58] sm:$0x3] 0.0
          %220 = vst [vmem:[#allocation2 + $0x60] sm:$0xff] 0.0
          %221 = vst [vmem:[#allocation2 + $0x68] sm:$0xff] 0.0
          %222 = vst [vmem:[#allocation2 + $0x70] sm:$0x3] 0.0
          %223 = vst [vmem:[#allocation2 + $0x78] sm:$0xff] 0.0
          %224 = vst [vmem:[#allocation2 + $0x80] sm:$0xff] 0.0
          %225 = vst [vmem:[#allocation2 + $0x88] sm:$0x3] 0.0
          %226 = vst [vmem:[#allocation2 + $0x90] sm:$0xff] 0.0
          %227 = vst [vmem:[#allocation2 + $0x98] sm:$0xff] 0.0
          %228 = vst [vmem:[#allocation2 + $0xa0] sm:$0x3] 0.0
          %229 = vst [vmem:[#allocation2 + $0xa8] sm:$0xff] 0.0
          %230 = vst [vmem:[#allocation2 + $0xb0] sm:$0xff] 0.0
          %231 = vst [vmem:[#allocation2 + $0xb8] sm:$0x3] 0.0
          %232 = vst [vmem:[#allocation2 + $0xc0] sm:$0xff] 0.0
          %233 = vst [vmem:[#allocation2 + $0xc8] sm:$0xff] 0.0
          %234 = vst [vmem:[#allocation2 + $0xd0] sm:$0x3] 0.0
          %235 = vst [vmem:[#allocation2 + $0xd8] sm:$0xff] 0.0
          %236 = vst [vmem:[#allocation2 + $0xe0] sm:$0xff] 0.0
          %237 = vst [vmem:[#allocation2 + $0xe8] sm:$0x3] 0.0
          %238 = vst [vmem:[#allocation2 + $0xf0] sm:$0xff] 0.0
          %239 = vst [vmem:[#allocation2 + $0xf8] sm:$0xff] 0.0
          %240 = vst [vmem:[#allocation2 + $0x100] sm:$0x3] 0.0
          %241 = vst [vmem:[#allocation2 + $0x108] sm:$0xff] 0.0
          %242 = vst [vmem:[#allocation2 + $0x110] sm:$0xff] 0.0
          %243 = vst [vmem:[#allocation2 + $0x118] sm:$0x3] 0.0
          %244 = vst [vmem:[#allocation2 + $0x120] sm:$0xff] 0.0
          %245 = vst [vmem:[#allocation2 + $0x128] sm:$0xff] 0.0
          %246 = vst [vmem:[#allocation2 + $0x130] sm:$0x3] 0.0
          %247 = vst [vmem:[#allocation2 + $0x138] sm:$0xff] 0.0
          %248 = vst [vmem:[#allocation2 + $0x140] sm:$0xff] 0.0
          %249 = vst [vmem:[#allocation2 + $0x148] sm:$0x3] 0.0
          %250 = vst [vmem:[#allocation2 + $0x150] sm:$0xff] 0.0
          %251 = vst [vmem:[#allocation2 + $0x158] sm:$0xff] 0.0
          %252 = vst [vmem:[#allocation2 + $0x160] sm:$0x3] 0.0
          %253 = vst [vmem:[#allocation2 + $0x168] sm:$0xff] 0.0
          %254 = vst [vmem:[#allocation2 + $0x170] sm:$0xff] 0.0
          %255 = vst [vmem:[#allocation2 + $0x178] sm:$0x3] 0.0
          %256 = vst [vmem:[#allocation2 + $0x180] sm:$0xff] 0.0
          %257 = vst [vmem:[#allocation2 + $0x188] sm:$0xff] 0.0
          %258 = vst [vmem:[#allocation2 + $0x190] sm:$0x3] 0.0
          %259 = vst [vmem:[#allocation2 + $0x198] sm:$0xff] 0.0
          %260 = vst [vmem:[#allocation2 + $0x1a0] sm:$0xff] 0.0
          %261 = vst [vmem:[#allocation2 + $0x1a8] sm:$0x3] 0.0
        $region44: #{tpu_custom_call.1} parent=31 // pred_fallthru
          _
        %v262 = vld [vmem:[%s177] sm:$0xff]
        %v263 = vld [vmem:[%s177 + $0x8] sm:$0xff]
        %v264 = vld [vmem:[%s177 + $0x10] sm:$0xff]
        %v265 = vld [vmem:[%s177 + $0x18] sm:$0xff]
        %v266 = vld [vmem:[%s177 + $0x20] sm:$0xff]
        %v267 = vld [vmem:[%s177 + $0x28] sm:$0xff]
        %v268 = vld [vmem:[%s177 + $0x30] sm:$0xff]
        %v269 = vld [vmem:[%s177 + $0x38] sm:$0xff]
        %v270 = vld [vmem:[%s177 + $0x40] sm:$0xff]
        %v271 = vld [vmem:[%s177 + $0x48] sm:$0xff]
        %v272 = vld [vmem:[%s177 + $0x50] sm:$0xff]
        %v273 = vld [vmem:[%s177 + $0x58] sm:$0xff]
        %v274 = vld [vmem:[%s177 + $0x60] sm:$0xff]
        %v275 = vld [vmem:[%s177 + $0x68] sm:$0xff]
        %v276 = vld [vmem:[%s177 + $0x70] sm:$0xff]
        %v277 = vld [vmem:[%s177 + $0x78] sm:$0xff]
        %v278 = vld [vmem:[%s177 + $0x80] sm:$0xff]
        %v279 = vld [vmem:[%s177 + $0x88] sm:$0xff]
        %v280 = vld [vmem:[%s177 + $0x90] sm:$0xff]
        %v281 = vld [vmem:[%s177 + $0x98] sm:$0xff]
        %v282 = vld [vmem:[%s177 + $0xa0] sm:$0xff]
        %v283 = vld [vmem:[%s177 + $0xa8] sm:$0xff]
        %v284 = vld [vmem:[%s177 + $0xb0] sm:$0xff]
        %v285 = vld [vmem:[%s177 + $0xb8] sm:$0xff]
        %v286 = vld [vmem:[%s177 + $0xc0] sm:$0xff]
        %v287 = vld [vmem:[%s177 + $0xc8] sm:$0xff]
        %v288 = vld [vmem:[%s177 + $0xd0] sm:$0xff]
        %v289 = vld [vmem:[%s177 + $0xd8] sm:$0xff]
        %v290 = vld [vmem:[%s177 + $0xe0] sm:$0xff]
        %v291 = vld [vmem:[%s177 + $0xe8] sm:$0xff]
        %v292 = vld [vmem:[%s177 + $0xf0] sm:$0xff]
        %v293 = vld [vmem:[%s177 + $0xf8] sm:$0xff]
        %s294 = scalar_lea.vmem [#allocation2], 24
        %295 = vst [vmem:[%s294 + $0x1] sm:$0xff] %v262
        %296 = vst [vmem:[%s294 + $0x9] sm:$0xff] %v263
        %297 = vst [vmem:[%s294 + $0x19] sm:$0xff] %v264
        %298 = vst [vmem:[%s294 + $0x21] sm:$0xff] %v265
        %299 = vst [vmem:[%s294 + $0x31] sm:$0xff] %v266
        %300 = vst [vmem:[%s294 + $0x39] sm:$0xff] %v267
        %301 = vst [vmem:[%s294 + $0x49] sm:$0xff] %v268
        %302 = vst [vmem:[%s294 + $0x51] sm:$0xff] %v269
        %303 = vst [vmem:[%s294 + $0x61] sm:$0xff] %v270
        %304 = vst [vmem:[%s294 + $0x69] sm:$0xff] %v271
        %305 = vst [vmem:[%s294 + $0x79] sm:$0xff] %v272
        %306 = vst [vmem:[%s294 + $0x81] sm:$0xff] %v273
        %307 = vst [vmem:[%s294 + $0x91] sm:$0xff] %v274
        %308 = vst [vmem:[%s294 + $0x99] sm:$0xff] %v275
        %309 = vst [vmem:[%s294 + $0xa9] sm:$0xff] %v276
        %310 = vst [vmem:[%s294 + $0xb1] sm:$0xff] %v277
        %311 = vst [vmem:[%s294 + $0xc1] sm:$0xff] %v278
        %312 = vst [vmem:[%s294 + $0xc9] sm:$0xff] %v279
        %313 = vst [vmem:[%s294 + $0xd9] sm:$0xff] %v280
        %314 = vst [vmem:[%s294 + $0xe1] sm:$0xff] %v281
        %315 = vst [vmem:[%s294 + $0xf1] sm:$0xff] %v282
        %316 = vst [vmem:[%s294 + $0xf9] sm:$0xff] %v283
        %317 = vst [vmem:[%s294 + $0x109] sm:$0xff] %v284
        %318 = vst [vmem:[%s294 + $0x111] sm:$0xff] %v285
        %319 = vst [vmem:[%s294 + $0x121] sm:$0xff] %v286
        %320 = vst [vmem:[%s294 + $0x129] sm:$0xff] %v287
        %321 = vst [vmem:[%s294 + $0x139] sm:$0xff] %v288
        %322 = vst [vmem:[%s294 + $0x141] sm:$0xff] %v289
        %323 = vst [vmem:[%s294 + $0x151] sm:$0xff] %v290
        %324 = vst [vmem:[%s294 + $0x159] sm:$0xff] %v291
        %325 = vst [vmem:[%s294 + $0x169] sm:$0xff] %v292
        %326 = vst [vmem:[%s294 + $0x171] sm:$0xff] %v293
        %v327 = vld [vmem:[#allocation6] sm:$0xff]
        %v328 = vld [vmem:[#allocation6 + $0x8] sm:$0x1]
        %v329 = vld [vmem:[%s2] sm:$0x1]
        %v331 = vlaneseq
        %v332 = vshrl.u32 %v331, 7
        %v333 = vsub.s32 0, %v332
        %v334 = vrot.slane %v329, %v333
        %v336 = vadd.f32 %v262, %v334
        %v337 = vadd.f32 %v263, %v334
        %v338 = vadd.f32 %v264, %v334
        %v339 = vadd.f32 %v265, %v334
        %v340 = vadd.f32 %v266, %v334
        %v341 = vadd.f32 %v267, %v334
        %v342 = vadd.f32 %v268, %v334
        %v343 = vadd.f32 %v269, %v334
        %v344 = vadd.f32 %v270, %v334
        %v345 = vadd.f32 %v271, %v334
        %v346 = vadd.f32 %v272, %v334
        %v347 = vadd.f32 %v273, %v334
        %v348 = vadd.f32 %v274, %v334
        %v349 = vadd.f32 %v275, %v334
        %v350 = vadd.f32 %v276, %v334
        %v351 = vadd.f32 %v277, %v334
        %v352 = vadd.f32 %v278, %v334
        %v353 = vadd.f32 %v279, %v334
        %v354 = vadd.f32 %v280, %v334
        %v355 = vadd.f32 %v281, %v334
        %v356 = vadd.f32 %v282, %v334
        %v357 = vadd.f32 %v283, %v334
        %v358 = vadd.f32 %v284, %v334
        %v359 = vadd.f32 %v285, %v334
        %v360 = vadd.f32 %v286, %v334
        %v361 = vadd.f32 %v287, %v334
        %v362 = vadd.f32 %v288, %v334
        %v363 = vadd.f32 %v289, %v334
        %v364 = vadd.f32 %v290, %v334
        %v365 = vadd.f32 %v291, %v334
        %v366 = vadd.f32 %v292, %v334
        %v367 = vadd.f32 %v293, %v334
        %v368 = vld [vmem:[#allocation2] sm:$0xff]
        %v369 = vld [vmem:[#allocation2 + $0x8] sm:$0xff]
        %v370 = vld [vmem:[#allocation2 + $0x18] sm:$0xff]
        %v371 = vld [vmem:[#allocation2 + $0x20] sm:$0xff]
        %v372 = vld [vmem:[#allocation2 + $0x30] sm:$0xff]
        %v373 = vld [vmem:[#allocation2 + $0x38] sm:$0xff]
        %v374 = vld [vmem:[#allocation2 + $0x48] sm:$0xff]
        %v375 = vld [vmem:[#allocation2 + $0x50] sm:$0xff]
        %v376 = vld [vmem:[#allocation2 + $0x60] sm:$0xff]
        %v377 = vld [vmem:[#allocation2 + $0x68] sm:$0xff]
        %v378 = vld [vmem:[#allocation2 + $0x78] sm:$0xff]
        %v379 = vld [vmem:[#allocation2 + $0x80] sm:$0xff]
        %v380 = vld [vmem:[#allocation2 + $0x90] sm:$0xff]
        %v381 = vld [vmem:[#allocation2 + $0x98] sm:$0xff]
        %v382 = vld [vmem:[#allocation2 + $0xa8] sm:$0xff]
        %v383 = vld [vmem:[#allocation2 + $0xb0] sm:$0xff]
        %v384 = vld [vmem:[#allocation2 + $0xc0] sm:$0xff]
        %v385 = vld [vmem:[#allocation2 + $0xc8] sm:$0xff]
        %v386 = vld [vmem:[#allocation2 + $0xd8] sm:$0xff]
        %v387 = vld [vmem:[#allocation2 + $0xe0] sm:$0xff]
        %v388 = vld [vmem:[#allocation2 + $0xf0] sm:$0xff]
        %v389 = vld [vmem:[#allocation2 + $0xf8] sm:$0xff]
        %v390 = vld [vmem:[#allocation2 + $0x108] sm:$0xff]
        %v391 = vld [vmem:[#allocation2 + $0x110] sm:$0xff]
        %v392 = vld [vmem:[#allocation2 + $0x120] sm:$0xff]
        %v393 = vld [vmem:[#allocation2 + $0x128] sm:$0xff]
        %v394 = vld [vmem:[#allocation2 + $0x138] sm:$0xff]
        %v395 = vld [vmem:[#allocation2 + $0x140] sm:$0xff]
        %v396 = vld [vmem:[#allocation2 + $0x150] sm:$0xff]
        %v397 = vld [vmem:[#allocation2 + $0x158] sm:$0xff]
        %v398 = vld [vmem:[#allocation2 + $0x168] sm:$0xff]
        %v399 = vld [vmem:[#allocation2 + $0x170] sm:$0xff]
        %v400 = vld [vmem:[#allocation2 + $0x180] sm:$0xff]
        %v401 = vld [vmem:[#allocation2 + $0x188] sm:$0xff]
        %v402 = vld [vmem:[#allocation2 + $0x198] sm:$0xff]
        %v403 = vld [vmem:[#allocation2 + $0x1a0] sm:$0xff]
        %v404 = vlaneseq
        %v405 = vshrl.u32 %v404, 7
        %v406 = vsub.s32 0, %v405
        %v407 = vrot.slane %v327, %v406
        %v408 = vmul.f32 %v368, %v407
        %v409 = vmul.f32 %v369, %v407
        %v410 = vmul.f32 %v370, %v407
        %v411 = vmul.f32 %v371, %v407
        %v412 = vmul.f32 %v372, %v407
        %v413 = vmul.f32 %v373, %v407
        %v414 = vmul.f32 %v374, %v407
        %v415 = vmul.f32 %v375, %v407
        %v416 = vmul.f32 %v376, %v407
        %v417 = vmul.f32 %v377, %v407
        %v418 = vmul.f32 %v378, %v407
        %v419 = vmul.f32 %v379, %v407
        %v420 = vmul.f32 %v380, %v407
        %v421 = vmul.f32 %v381, %v407
        %v422 = vmul.f32 %v382, %v407
        %v423 = vmul.f32 %v383, %v407
        %v424 = vmul.f32 %v384, %v407
        %v425 = vmul.f32 %v385, %v407
        %v426 = vmul.f32 %v386, %v407
        %v427 = vmul.f32 %v387, %v407
        %v428 = vmul.f32 %v388, %v407
        %v429 = vmul.f32 %v389, %v407
        %v430 = vmul.f32 %v390, %v407
        %v431 = vmul.f32 %v391, %v407
        %v432 = vmul.f32 %v392, %v407
        %v433 = vmul.f32 %v393, %v407
        %v434 = vmul.f32 %v394, %v407
        %v435 = vmul.f32 %v395, %v407
        %v436 = vmul.f32 %v396, %v407
        %v437 = vmul.f32 %v397, %v407
        %v438 = vmul.f32 %v398, %v407
        %v439 = vmul.f32 %v399, %v407
        %v440 = vadd.f32 %v336, %v408
        %v441 = vadd.f32 %v337, %v409
        %v442 = vadd.f32 %v338, %v410
        %v443 = vadd.f32 %v339, %v411
        %v444 = vadd.f32 %v340, %v412
        %v445 = vadd.f32 %v341, %v413
        %v446 = vadd.f32 %v342, %v414
        %v447 = vadd.f32 %v343, %v415
        %v448 = vadd.f32 %v344, %v416
        %v449 = vadd.f32 %v345, %v417
        %v450 = vadd.f32 %v346, %v418
        %v451 = vadd.f32 %v347, %v419
        %v452 = vadd.f32 %v348, %v420
        %v453 = vadd.f32 %v349, %v421
        %v454 = vadd.f32 %v350, %v422
        %v455 = vadd.f32 %v351, %v423
        %v456 = vadd.f32 %v352, %v424
        %v457 = vadd.f32 %v353, %v425
        %v458 = vadd.f32 %v354, %v426
        %v459 = vadd.f32 %v355, %v427
        %v460 = vadd.f32 %v356, %v428
        %v461 = vadd.f32 %v357, %v429
        %v462 = vadd.f32 %v358, %v430
        %v463 = vadd.f32 %v359, %v431
        %v464 = vadd.f32 %v360, %v432
        %v465 = vadd.f32 %v361, %v433
        %v466 = vadd.f32 %v362, %v434
        %v467 = vadd.f32 %v363, %v435
        %v468 = vadd.f32 %v364, %v436
        %v469 = vadd.f32 %v365, %v437
        %v470 = vadd.f32 %v366, %v438
        %v471 = vadd.f32 %v367, %v439
        %v472 = vlaneseq
        %v473 = vshrl.u32 %v472, 7
        %v474 = vsub.s32 3, %v473
        %v475 = vrot.slane %v327, %v474
        %v476 = vmul.f32 %v370, %v475
        %v477 = vmul.f32 %v371, %v475
        %v478 = vmul.f32 %v372, %v475
        %v479 = vmul.f32 %v373, %v475
        %v480 = vmul.f32 %v374, %v475
        %v481 = vmul.f32 %v375, %v475
        %v482 = vmul.f32 %v376, %v475
        %v483 = vmul.f32 %v377, %v475
        %v484 = vmul.f32 %v378, %v475
        %v485 = vmul.f32 %v379, %v475
        %v486 = vmul.f32 %v380, %v475
        %v487 = vmul.f32 %v381, %v475
        %v488 = vmul.f32 %v382, %v475
        %v489 = vmul.f32 %v383, %v475
        %v490 = vmul.f32 %v384, %v475
        %v491 = vmul.f32 %v385, %v475
        %v492 = vmul.f32 %v386, %v475
        %v493 = vmul.f32 %v387, %v475
        %v494 = vmul.f32 %v388, %v475
        %v495 = vmul.f32 %v389, %v475
        %v496 = vmul.f32 %v390, %v475
        %v497 = vmul.f32 %v391, %v475
        %v498 = vmul.f32 %v392, %v475
        %v499 = vmul.f32 %v393, %v475
        %v500 = vmul.f32 %v394, %v475
        %v501 = vmul.f32 %v395, %v475
        %v502 = vmul.f32 %v396, %v475
        %v503 = vmul.f32 %v397, %v475
        %v504 = vmul.f32 %v398, %v475
        %v505 = vmul.f32 %v399, %v475
        %v506 = vmul.f32 %v400, %v475
        %v507 = vmul.f32 %v401, %v475
        %v508 = vadd.f32 %v440, %v476
        %v509 = vadd.f32 %v441, %v477
        %v510 = vadd.f32 %v442, %v478
        %v511 = vadd.f32 %v443, %v479
        %v512 = vadd.f32 %v444, %v480
        %v513 = vadd.f32 %v445, %v481
        %v514 = vadd.f32 %v446, %v482
        %v515 = vadd.f32 %v447, %v483
        %v516 = vadd.f32 %v448, %v484
        %v517 = vadd.f32 %v449, %v485
        %v518 = vadd.f32 %v450, %v486
        %v519 = vadd.f32 %v451, %v487
        %v520 = vadd.f32 %v452, %v488
        %v521 = vadd.f32 %v453, %v489
        %v522 = vadd.f32 %v454, %v490
        %v523 = vadd.f32 %v455, %v491
        %v524 = vadd.f32 %v456, %v492
        %v525 = vadd.f32 %v457, %v493
        %v526 = vadd.f32 %v458, %v494
        %v527 = vadd.f32 %v459, %v495
        %v528 = vadd.f32 %v460, %v496
        %v529 = vadd.f32 %v461, %v497
        %v530 = vadd.f32 %v462, %v498
        %v531 = vadd.f32 %v463, %v499
        %v532 = vadd.f32 %v464, %v500
        %v533 = vadd.f32 %v465, %v501
        %v534 = vadd.f32 %v466, %v502
        %v535 = vadd.f32 %v467, %v503
        %v536 = vadd.f32 %v468, %v504
        %v537 = vadd.f32 %v469, %v505
        %v538 = vadd.f32 %v470, %v506
        %v539 = vadd.f32 %v471, %v507
        %v540 = vlaneseq
        %v541 = vshrl.u32 %v540, 7
        %v542 = vsub.s32 6, %v541
        %v543 = vrot.slane %v327, %v542
        %v544 = vmul.f32 %v372, %v543
        %v545 = vmul.f32 %v373, %v543
        %v546 = vmul.f32 %v374, %v543
        %v547 = vmul.f32 %v375, %v543
        %v548 = vmul.f32 %v376, %v543
        %v549 = vmul.f32 %v377, %v543
        %v550 = vmul.f32 %v378, %v543
        %v551 = vmul.f32 %v379, %v543
        %v552 = vmul.f32 %v380, %v543
        %v553 = vmul.f32 %v381, %v543
        %v554 = vmul.f32 %v382, %v543
        %v555 = vmul.f32 %v383, %v543
        %v556 = vmul.f32 %v384, %v543
        %v557 = vmul.f32 %v385, %v543
        %v558 = vmul.f32 %v386, %v543
        %v559 = vmul.f32 %v387, %v543
        %v560 = vmul.f32 %v388, %v543
        %v561 = vmul.f32 %v389, %v543
        %v562 = vmul.f32 %v390, %v543
        %v563 = vmul.f32 %v391, %v543
        %v564 = vmul.f32 %v392, %v543
        %v565 = vmul.f32 %v393, %v543
        %v566 = vmul.f32 %v394, %v543
        %v567 = vmul.f32 %v395, %v543
        %v568 = vmul.f32 %v396, %v543
        %v569 = vmul.f32 %v397, %v543
        %v570 = vmul.f32 %v398, %v543
        %v571 = vmul.f32 %v399, %v543
        %v572 = vmul.f32 %v400, %v543
        %v573 = vmul.f32 %v401, %v543
        %v574 = vmul.f32 %v402, %v543
        %v575 = vmul.f32 %v403, %v543
        %v576 = vadd.f32 %v508, %v544
        %v577 = vadd.f32 %v509, %v545
        %v578 = vadd.f32 %v510, %v546
        %v579 = vadd.f32 %v511, %v547
        %v580 = vadd.f32 %v512, %v548
        %v581 = vadd.f32 %v513, %v549
        %v582 = vadd.f32 %v514, %v550
        %v583 = vadd.f32 %v515, %v551
        %v584 = vadd.f32 %v516, %v552
        %v585 = vadd.f32 %v517, %v553
        %v586 = vadd.f32 %v518, %v554
        %v587 = vadd.f32 %v519, %v555
        %v588 = vadd.f32 %v520, %v556
        %v589 = vadd.f32 %v521, %v557
        %v590 = vadd.f32 %v522, %v558
        %v591 = vadd.f32 %v523, %v559
        %v592 = vadd.f32 %v524, %v560
        %v593 = vadd.f32 %v525, %v561
        %v594 = vadd.f32 %v526, %v562
        %v595 = vadd.f32 %v527, %v563
        %v596 = vadd.f32 %v528, %v564
        %v597 = vadd.f32 %v529, %v565
        %v598 = vadd.f32 %v530, %v566
        %v599 = vadd.f32 %v531, %v567
        %v600 = vadd.f32 %v532, %v568
        %v601 = vadd.f32 %v533, %v569
        %v602 = vadd.f32 %v534, %v570
        %v603 = vadd.f32 %v535, %v571
        %v604 = vadd.f32 %v536, %v572
        %v605 = vadd.f32 %v537, %v573
        %v606 = vadd.f32 %v538, %v574
        %v607 = vadd.f32 %v539, %v575
        %v608 = vld [vmem:[#allocation2 + $0x1] sm:$0xff]
        %v609 = vld [vmem:[#allocation2 + $0x9] sm:$0xff]
        %v610 = vld [vmem:[#allocation2 + $0x19] sm:$0xff]
        %v611 = vld [vmem:[#allocation2 + $0x21] sm:$0xff]
        %v612 = vld [vmem:[#allocation2 + $0x31] sm:$0xff]
        %v613 = vld [vmem:[#allocation2 + $0x39] sm:$0xff]
        %v614 = vld [vmem:[#allocation2 + $0x49] sm:$0xff]
        %v615 = vld [vmem:[#allocation2 + $0x51] sm:$0xff]
        %v616 = vld [vmem:[#allocation2 + $0x61] sm:$0xff]
        %v617 = vld [vmem:[#allocation2 + $0x69] sm:$0xff]
        %v618 = vld [vmem:[#allocation2 + $0x79] sm:$0xff]
        %v619 = vld [vmem:[#allocation2 + $0x81] sm:$0xff]
        %v620 = vld [vmem:[#allocation2 + $0x91] sm:$0xff]
        %v621 = vld [vmem:[#allocation2 + $0x99] sm:$0xff]
        %v622 = vld [vmem:[#allocation2 + $0xa9] sm:$0xff]
        %v623 = vld [vmem:[#allocation2 + $0xb1] sm:$0xff]
        %v624 = vld [vmem:[#allocation2 + $0xc1] sm:$0xff]
        %v625 = vld [vmem:[#allocation2 + $0xc9] sm:$0xff]
        %v626 = vld [vmem:[#allocation2 + $0xd9] sm:$0xff]
        %v627 = vld [vmem:[#allocation2 + $0xe1] sm:$0xff]
        %v628 = vld [vmem:[#allocation2 + $0xf1] sm:$0xff]
        %v629 = vld [vmem:[#allocation2 + $0xf9] sm:$0xff]
        %v630 = vld [vmem:[#allocation2 + $0x109] sm:$0xff]
        %v631 = vld [vmem:[#allocation2 + $0x111] sm:$0xff]
        %v632 = vld [vmem:[#allocation2 + $0x121] sm:$0xff]
        %v633 = vld [vmem:[#allocation2 + $0x129] sm:$0xff]
        %v634 = vld [vmem:[#allocation2 + $0x139] sm:$0xff]
        %v635 = vld [vmem:[#allocation2 + $0x141] sm:$0xff]
        %v636 = vld [vmem:[#allocation2 + $0x151] sm:$0xff]
        %v637 = vld [vmem:[#allocation2 + $0x159] sm:$0xff]
        %v638 = vld [vmem:[#allocation2 + $0x169] sm:$0xff]
        %v639 = vld [vmem:[#allocation2 + $0x171] sm:$0xff]
        %v640 = vld [vmem:[#allocation2 + $0x181] sm:$0xff]
        %v641 = vld [vmem:[#allocation2 + $0x189] sm:$0xff]
        %v642 = vld [vmem:[#allocation2 + $0x199] sm:$0xff]
        %v643 = vld [vmem:[#allocation2 + $0x1a1] sm:$0xff]
        %v644 = vlaneseq
        %v645 = vshrl.u32 %v644, 7
        %v646 = vsub.s32 1, %v645
        %v647 = vrot.slane %v327, %v646
        %v648 = vmul.f32 %v608, %v647
        %v649 = vmul.f32 %v609, %v647
        %v650 = vmul.f32 %v610, %v647
        %v651 = vmul.f32 %v611, %v647
        %v652 = vmul.f32 %v612, %v647
        %v653 = vmul.f32 %v613, %v647
        %v654 = vmul.f32 %v614, %v647
        %v655 = vmul.f32 %v615, %v647
        %v656 = vmul.f32 %v616, %v647
        %v657 = vmul.f32 %v617, %v647
        %v658 = vmul.f32 %v618, %v647
        %v659 = vmul.f32 %v619, %v647
        %v660 = vmul.f32 %v620, %v647
        %v661 = vmul.f32 %v621, %v647
        %v662 = vmul.f32 %v622, %v647
        %v663 = vmul.f32 %v623, %v647
        %v664 = vmul.f32 %v624, %v647
        %v665 = vmul.f32 %v625, %v647
        %v666 = vmul.f32 %v626, %v647
        %v667 = vmul.f32 %v627, %v647
        %v668 = vmul.f32 %v628, %v647
        %v669 = vmul.f32 %v629, %v647
        %v670 = vmul.f32 %v630, %v647
        %v671 = vmul.f32 %v631, %v647
        %v672 = vmul.f32 %v632, %v647
        %v673 = vmul.f32 %v633, %v647
        %v674 = vmul.f32 %v634, %v647
        %v675 = vmul.f32 %v635, %v647
        %v676 = vmul.f32 %v636, %v647
        %v677 = vmul.f32 %v637, %v647
        %v678 = vmul.f32 %v638, %v647
        %v679 = vmul.f32 %v639, %v647
        %v680 = vadd.f32 %v576, %v648
        %v681 = vadd.f32 %v577, %v649
        %v682 = vadd.f32 %v578, %v650
        %v683 = vadd.f32 %v579, %v651
        %v684 = vadd.f32 %v580, %v652
        %v685 = vadd.f32 %v581, %v653
        %v686 = vadd.f32 %v582, %v654
        %v687 = vadd.f32 %v583, %v655
        %v688 = vadd.f32 %v584, %v656
        %v689 = vadd.f32 %v585, %v657
        %v690 = vadd.f32 %v586, %v658
        %v691 = vadd.f32 %v587, %v659
        %v692 = vadd.f32 %v588, %v660
        %v693 = vadd.f32 %v589, %v661
        %v694 = vadd.f32 %v590, %v662
        %v695 = vadd.f32 %v591, %v663
        %v696 = vadd.f32 %v592, %v664
        %v697 = vadd.f32 %v593, %v665
        %v698 = vadd.f32 %v594, %v666
        %v699 = vadd.f32 %v595, %v667
        %v700 = vadd.f32 %v596, %v668
        %v701 = vadd.f32 %v597, %v669
        %v702 = vadd.f32 %v598, %v670
        %v703 = vadd.f32 %v599, %v671
        %v704 = vadd.f32 %v600, %v672
        %v705 = vadd.f32 %v601, %v673
        %v706 = vadd.f32 %v602, %v674
        %v707 = vadd.f32 %v603, %v675
        %v708 = vadd.f32 %v604, %v676
        %v709 = vadd.f32 %v605, %v677
        %v710 = vadd.f32 %v606, %v678
        %v711 = vadd.f32 %v607, %v679
        %v712 = vlaneseq
        %v713 = vshrl.u32 %v712, 7
        %v714 = vsub.s32 4, %v713
        %v715 = vrot.slane %v327, %v714
        %v716 = vmul.f32 %v610, %v715
        %v717 = vmul.f32 %v611, %v715
        %v718 = vmul.f32 %v612, %v715
        %v719 = vmul.f32 %v613, %v715
        %v720 = vmul.f32 %v614, %v715
        %v721 = vmul.f32 %v615, %v715
        %v722 = vmul.f32 %v616, %v715
        %v723 = vmul.f32 %v617, %v715
        %v724 = vmul.f32 %v618, %v715
        %v725 = vmul.f32 %v619, %v715
        %v726 = vmul.f32 %v620, %v715
        %v727 = vmul.f32 %v621, %v715
        %v728 = vmul.f32 %v622, %v715
        %v729 = vmul.f32 %v623, %v715
        %v730 = vmul.f32 %v624, %v715
        %v731 = vmul.f32 %v625, %v715
        %v732 = vmul.f32 %v626, %v715
        %v733 = vmul.f32 %v627, %v715
        %v734 = vmul.f32 %v628, %v715
        %v735 = vmul.f32 %v629, %v715
        %v736 = vmul.f32 %v630, %v715
        %v737 = vmul.f32 %v631, %v715
        %v738 = vmul.f32 %v632, %v715
        %v739 = vmul.f32 %v633, %v715
        %v740 = vmul.f32 %v634, %v715
        %v741 = vmul.f32 %v635, %v715
        %v742 = vmul.f32 %v636, %v715
        %v743 = vmul.f32 %v637, %v715
        %v744 = vmul.f32 %v638, %v715
        %v745 = vmul.f32 %v639, %v715
        %v746 = vmul.f32 %v640, %v715
        %v747 = vmul.f32 %v641, %v715
        %v748 = vadd.f32 %v680, %v716
        %v749 = vadd.f32 %v681, %v717
        %v750 = vadd.f32 %v682, %v718
        %v751 = vadd.f32 %v683, %v719
        %v752 = vadd.f32 %v684, %v720
        %v753 = vadd.f32 %v685, %v721
        %v754 = vadd.f32 %v686, %v722
        %v755 = vadd.f32 %v687, %v723
        %v756 = vadd.f32 %v688, %v724
        %v757 = vadd.f32 %v689, %v725
        %v758 = vadd.f32 %v690, %v726
        %v759 = vadd.f32 %v691, %v727
        %v760 = vadd.f32 %v692, %v728
        %v761 = vadd.f32 %v693, %v729
        %v762 = vadd.f32 %v694, %v730
        %v763 = vadd.f32 %v695, %v731
        %v764 = vadd.f32 %v696, %v732
        %v765 = vadd.f32 %v697, %v733
        %v766 = vadd.f32 %v698, %v734
        %v767 = vadd.f32 %v699, %v735
        %v768 = vadd.f32 %v700, %v736
        %v769 = vadd.f32 %v701, %v737
        %v770 = vadd.f32 %v702, %v738
        %v771 = vadd.f32 %v703, %v739
        %v772 = vadd.f32 %v704, %v740
        %v773 = vadd.f32 %v705, %v741
        %v774 = vadd.f32 %v706, %v742
        %v775 = vadd.f32 %v707, %v743
        %v776 = vadd.f32 %v708, %v744
        %v777 = vadd.f32 %v709, %v745
        %v778 = vadd.f32 %v710, %v746
        %v779 = vadd.f32 %v711, %v747
        %v780 = vlaneseq
        %v781 = vshrl.u32 %v780, 7
        %v782 = vsub.s32 7, %v781
        %v783 = vrot.slane %v327, %v782
        %v784 = vmul.f32 %v612, %v783
        %v785 = vmul.f32 %v613, %v783
        %v786 = vmul.f32 %v614, %v783
        %v787 = vmul.f32 %v615, %v783
        %v788 = vmul.f32 %v616, %v783
        %v789 = vmul.f32 %v617, %v783
        %v790 = vmul.f32 %v618, %v783
        %v791 = vmul.f32 %v619, %v783
        %v792 = vmul.f32 %v620, %v783
        %v793 = vmul.f32 %v621, %v783
        %v794 = vmul.f32 %v622, %v783
        %v795 = vmul.f32 %v623, %v783
        %v796 = vmul.f32 %v624, %v783
        %v797 = vmul.f32 %v625, %v783
        %v798 = vmul.f32 %v626, %v783
        %v799 = vmul.f32 %v627, %v783
        %v800 = vmul.f32 %v628, %v783
        %v801 = vmul.f32 %v629, %v783
        %v802 = vmul.f32 %v630, %v783
        %v803 = vmul.f32 %v631, %v783
        %v804 = vmul.f32 %v632, %v783
        %v805 = vmul.f32 %v633, %v783
        %v806 = vmul.f32 %v634, %v783
        %v807 = vmul.f32 %v635, %v783
        %v808 = vmul.f32 %v636, %v783
        %v809 = vmul.f32 %v637, %v783
        %v810 = vmul.f32 %v638, %v783
        %v811 = vmul.f32 %v639, %v783
        %v812 = vmul.f32 %v640, %v783
        %v813 = vmul.f32 %v641, %v783
        %v814 = vmul.f32 %v642, %v783
        %v815 = vmul.f32 %v643, %v783
        %v816 = vadd.f32 %v748, %v784
        %v817 = vadd.f32 %v749, %v785
        %v818 = vadd.f32 %v750, %v786
        %v819 = vadd.f32 %v751, %v787
        %v820 = vadd.f32 %v752, %v788
        %v821 = vadd.f32 %v753, %v789
        %v822 = vadd.f32 %v754, %v790
        %v823 = vadd.f32 %v755, %v791
        %v824 = vadd.f32 %v756, %v792
        %v825 = vadd.f32 %v757, %v793
        %v826 = vadd.f32 %v758, %v794
        %v827 = vadd.f32 %v759, %v795
        %v828 = vadd.f32 %v760, %v796
        %v829 = vadd.f32 %v761, %v797
        %v830 = vadd.f32 %v762, %v798
        %v831 = vadd.f32 %v763, %v799
        %v832 = vadd.f32 %v764, %v800
        %v833 = vadd.f32 %v765, %v801
        %v834 = vadd.f32 %v766, %v802
        %v835 = vadd.f32 %v767, %v803
        %v836 = vadd.f32 %v768, %v804
        %v837 = vadd.f32 %v769, %v805
        %v838 = vadd.f32 %v770, %v806
        %v839 = vadd.f32 %v771, %v807
        %v840 = vadd.f32 %v772, %v808
        %v841 = vadd.f32 %v773, %v809
        %v842 = vadd.f32 %v774, %v810
        %v843 = vadd.f32 %v775, %v811
        %v844 = vadd.f32 %v776, %v812
        %v845 = vadd.f32 %v777, %v813
        %v846 = vadd.f32 %v778, %v814
        %v847 = vadd.f32 %v779, %v815
        %v848 = vld [vmem:[#allocation2 + $0x2] sm:$0xff]
        %v849 = vld [vmem:[#allocation2 + $0xa] sm:$0xff]
        %v850 = vld [vmem:[#allocation2 + $0x1a] sm:$0xff]
        %v851 = vld [vmem:[#allocation2 + $0x22] sm:$0xff]
        %v852 = vld [vmem:[#allocation2 + $0x32] sm:$0xff]
        %v853 = vld [vmem:[#allocation2 + $0x3a] sm:$0xff]
        %v854 = vld [vmem:[#allocation2 + $0x4a] sm:$0xff]
        %v855 = vld [vmem:[#allocation2 + $0x52] sm:$0xff]
        %v856 = vld [vmem:[#allocation2 + $0x62] sm:$0xff]
        %v857 = vld [vmem:[#allocation2 + $0x6a] sm:$0xff]
        %v858 = vld [vmem:[#allocation2 + $0x7a] sm:$0xff]
        %v859 = vld [vmem:[#allocation2 + $0x82] sm:$0xff]
        %v860 = vld [vmem:[#allocation2 + $0x92] sm:$0xff]
        %v861 = vld [vmem:[#allocation2 + $0x9a] sm:$0xff]
        %v862 = vld [vmem:[#allocation2 + $0xaa] sm:$0xff]
        %v863 = vld [vmem:[#allocation2 + $0xb2] sm:$0xff]
        %v864 = vld [vmem:[#allocation2 + $0xc2] sm:$0xff]
        %v865 = vld [vmem:[#allocation2 + $0xca] sm:$0xff]
        %v866 = vld [vmem:[#allocation2 + $0xda] sm:$0xff]
        %v867 = vld [vmem:[#allocation2 + $0xe2] sm:$0xff]
        %v868 = vld [vmem:[#allocation2 + $0xf2] sm:$0xff]
        %v869 = vld [vmem:[#allocation2 + $0xfa] sm:$0xff]
        %v870 = vld [vmem:[#allocation2 + $0x10a] sm:$0xff]
        %v871 = vld [vmem:[#allocation2 + $0x112] sm:$0xff]
        %v872 = vld [vmem:[#allocation2 + $0x122] sm:$0xff]
        %v873 = vld [vmem:[#allocation2 + $0x12a] sm:$0xff]
        %v874 = vld [vmem:[#allocation2 + $0x13a] sm:$0xff]
        %v875 = vld [vmem:[#allocation2 + $0x142] sm:$0xff]
        %v876 = vld [vmem:[#allocation2 + $0x152] sm:$0xff]
        %v877 = vld [vmem:[#allocation2 + $0x15a] sm:$0xff]
        %v878 = vld [vmem:[#allocation2 + $0x16a] sm:$0xff]
        %v879 = vld [vmem:[#allocation2 + $0x172] sm:$0xff]
        %v880 = vld [vmem:[#allocation2 + $0x182] sm:$0xff]
        %v881 = vld [vmem:[#allocation2 + $0x18a] sm:$0xff]
        %v882 = vld [vmem:[#allocation2 + $0x19a] sm:$0xff]
        %v883 = vld [vmem:[#allocation2 + $0x1a2] sm:$0xff]
        %v884 = vlaneseq
        %v885 = vshrl.u32 %v884, 7
        %v886 = vsub.s32 2, %v885
        %v887 = vrot.slane %v327, %v886
        %v888 = vmul.f32 %v848, %v887
        %v889 = vmul.f32 %v849, %v887
        %v890 = vmul.f32 %v850, %v887
        %v891 = vmul.f32 %v851, %v887
        %v892 = vmul.f32 %v852, %v887
        %v893 = vmul.f32 %v853, %v887
        %v894 = vmul.f32 %v854, %v887
        %v895 = vmul.f32 %v855, %v887
        %v896 = vmul.f32 %v856, %v887
        %v897 = vmul.f32 %v857, %v887
        %v898 = vmul.f32 %v858, %v887
        %v899 = vmul.f32 %v859, %v887
        %v900 = vmul.f32 %v860, %v887
        %v901 = vmul.f32 %v861, %v887
        %v902 = vmul.f32 %v862, %v887
        %v903 = vmul.f32 %v863, %v887
        %v904 = vmul.f32 %v864, %v887
        %v905 = vmul.f32 %v865, %v887
        %v906 = vmul.f32 %v866, %v887
        %v907 = vmul.f32 %v867, %v887
        %v908 = vmul.f32 %v868, %v887
        %v909 = vmul.f32 %v869, %v887
        %v910 = vmul.f32 %v870, %v887
        %v911 = vmul.f32 %v871, %v887
        %v912 = vmul.f32 %v872, %v887
        %v913 = vmul.f32 %v873, %v887
        %v914 = vmul.f32 %v874, %v887
        %v915 = vmul.f32 %v875, %v887
        %v916 = vmul.f32 %v876, %v887
        %v917 = vmul.f32 %v877, %v887
        %v918 = vmul.f32 %v878, %v887
        %v919 = vmul.f32 %v879, %v887
        %v920 = vadd.f32 %v816, %v888
        %v921 = vadd.f32 %v817, %v889
        %v922 = vadd.f32 %v818, %v890
        %v923 = vadd.f32 %v819, %v891
        %v924 = vadd.f32 %v820, %v892
        %v925 = vadd.f32 %v821, %v893
        %v926 = vadd.f32 %v822, %v894
        %v927 = vadd.f32 %v823, %v895
        %v928 = vadd.f32 %v824, %v896
        %v929 = vadd.f32 %v825, %v897
        %v930 = vadd.f32 %v826, %v898
        %v931 = vadd.f32 %v827, %v899
        %v932 = vadd.f32 %v828, %v900
        %v933 = vadd.f32 %v829, %v901
        %v934 = vadd.f32 %v830, %v902
        %v935 = vadd.f32 %v831, %v903
        %v936 = vadd.f32 %v832, %v904
        %v937 = vadd.f32 %v833, %v905
        %v938 = vadd.f32 %v834, %v906
        %v939 = vadd.f32 %v835, %v907
        %v940 = vadd.f32 %v836, %v908
        %v941 = vadd.f32 %v837, %v909
        %v942 = vadd.f32 %v838, %v910
        %v943 = vadd.f32 %v839, %v911
        %v944 = vadd.f32 %v840, %v912
        %v945 = vadd.f32 %v841, %v913
        %v946 = vadd.f32 %v842, %v914
        %v947 = vadd.f32 %v843, %v915
        %v948 = vadd.f32 %v844, %v916
        %v949 = vadd.f32 %v845, %v917
        %v950 = vadd.f32 %v846, %v918
        %v951 = vadd.f32 %v847, %v919
        %v952 = vlaneseq
        %v953 = vshrl.u32 %v952, 7
        %v954 = vsub.s32 5, %v953
        %v955 = vrot.slane %v327, %v954
        %v956 = vmul.f32 %v850, %v955
        %v957 = vmul.f32 %v851, %v955
        %v958 = vmul.f32 %v852, %v955
        %v959 = vmul.f32 %v853, %v955
        %v960 = vmul.f32 %v854, %v955
        %v961 = vmul.f32 %v855, %v955
        %v962 = vmul.f32 %v856, %v955
        %v963 = vmul.f32 %v857, %v955
        %v964 = vmul.f32 %v858, %v955
        %v965 = vmul.f32 %v859, %v955
        %v966 = vmul.f32 %v860, %v955
        %v967 = vmul.f32 %v861, %v955
        %v968 = vmul.f32 %v862, %v955
        %v969 = vmul.f32 %v863, %v955
        %v970 = vmul.f32 %v864, %v955
        %v971 = vmul.f32 %v865, %v955
        %v972 = vmul.f32 %v866, %v955
        %v973 = vmul.f32 %v867, %v955
        %v974 = vmul.f32 %v868, %v955
        %v975 = vmul.f32 %v869, %v955
        %v976 = vmul.f32 %v870, %v955
        %v977 = vmul.f32 %v871, %v955
        %v978 = vmul.f32 %v872, %v955
        %v979 = vmul.f32 %v873, %v955
        %v980 = vmul.f32 %v874, %v955
        %v981 = vmul.f32 %v875, %v955
        %v982 = vmul.f32 %v876, %v955
        %v983 = vmul.f32 %v877, %v955
        %v984 = vmul.f32 %v878, %v955
        %v985 = vmul.f32 %v879, %v955
        %v986 = vmul.f32 %v880, %v955
        %v987 = vmul.f32 %v881, %v955
        %v988 = vadd.f32 %v920, %v956
        %v989 = vadd.f32 %v921, %v957
        %v990 = vadd.f32 %v922, %v958
        %v991 = vadd.f32 %v923, %v959
        %v992 = vadd.f32 %v924, %v960
        %v993 = vadd.f32 %v925, %v961
        %v994 = vadd.f32 %v926, %v962
        %v995 = vadd.f32 %v927, %v963
        %v996 = vadd.f32 %v928, %v964
        %v997 = vadd.f32 %v929, %v965
        %v998 = vadd.f32 %v930, %v966
        %v999 = vadd.f32 %v931, %v967
        %v1000 = vadd.f32 %v932, %v968
        %v1001 = vadd.f32 %v933, %v969
        %v1002 = vadd.f32 %v934, %v970
        %v1003 = vadd.f32 %v935, %v971
        %v1004 = vadd.f32 %v936, %v972
        %v1005 = vadd.f32 %v937, %v973
        %v1006 = vadd.f32 %v938, %v974
        %v1007 = vadd.f32 %v939, %v975
        %v1008 = vadd.f32 %v940, %v976
        %v1009 = vadd.f32 %v941, %v977
        %v1010 = vadd.f32 %v942, %v978
        %v1011 = vadd.f32 %v943, %v979
        %v1012 = vadd.f32 %v944, %v980
        %v1013 = vadd.f32 %v945, %v981
        %v1014 = vadd.f32 %v946, %v982
        %v1015 = vadd.f32 %v947, %v983
        %v1016 = vadd.f32 %v948, %v984
        %v1017 = vadd.f32 %v949, %v985
        %v1018 = vadd.f32 %v950, %v986
        %v1019 = vadd.f32 %v951, %v987
        %v1020 = vlaneseq
        %v1021 = vshrl.u32 %v1020, 7
        %v1022 = vsub.s32 0, %v1021
        %v1023 = vrot.slane %v328, %v1022
        %v1024 = vmul.f32 %v852, %v1023
        %v1025 = vmul.f32 %v853, %v1023
        %v1026 = vmul.f32 %v854, %v1023
        %v1027 = vmul.f32 %v855, %v1023
        %v1028 = vmul.f32 %v856, %v1023
        %v1029 = vmul.f32 %v857, %v1023
        %v1030 = vmul.f32 %v858, %v1023
        %v1031 = vmul.f32 %v859, %v1023
        %v1032 = vmul.f32 %v860, %v1023
        %v1033 = vmul.f32 %v861, %v1023
        %v1034 = vmul.f32 %v862, %v1023
        %v1035 = vmul.f32 %v863, %v1023
        %v1036 = vmul.f32 %v864, %v1023
        %v1037 = vmul.f32 %v865, %v1023
        %v1038 = vmul.f32 %v866, %v1023
        %v1039 = vmul.f32 %v867, %v1023
        %v1040 = vmul.f32 %v868, %v1023
        %v1041 = vmul.f32 %v869, %v1023
        %v1042 = vmul.f32 %v870, %v1023
        %v1043 = vmul.f32 %v871, %v1023
        %v1044 = vmul.f32 %v872, %v1023
        %v1045 = vmul.f32 %v873, %v1023
        %v1046 = vmul.f32 %v874, %v1023
        %v1047 = vmul.f32 %v875, %v1023
        %v1048 = vmul.f32 %v876, %v1023
        %v1049 = vmul.f32 %v877, %v1023
        %v1050 = vmul.f32 %v878, %v1023
        %v1051 = vmul.f32 %v879, %v1023
        %v1052 = vmul.f32 %v880, %v1023
        %v1053 = vmul.f32 %v881, %v1023
        %v1054 = vmul.f32 %v882, %v1023
        %v1055 = vmul.f32 %v883, %v1023
        %v1056 = vadd.f32 %v988, %v1024
        %v1057 = vadd.f32 %v989, %v1025
        %v1058 = vadd.f32 %v990, %v1026
        %v1059 = vadd.f32 %v991, %v1027
        %v1060 = vadd.f32 %v992, %v1028
        %v1061 = vadd.f32 %v993, %v1029
        %v1062 = vadd.f32 %v994, %v1030
        %v1063 = vadd.f32 %v995, %v1031
        %v1064 = vadd.f32 %v996, %v1032
        %v1065 = vadd.f32 %v997, %v1033
        %v1066 = vadd.f32 %v998, %v1034
        %v1067 = vadd.f32 %v999, %v1035
        %v1068 = vadd.f32 %v1000, %v1036
        %v1069 = vadd.f32 %v1001, %v1037
        %v1070 = vadd.f32 %v1002, %v1038
        %v1071 = vadd.f32 %v1003, %v1039
        %v1072 = vadd.f32 %v1004, %v1040
        %v1073 = vadd.f32 %v1005, %v1041
        %v1074 = vadd.f32 %v1006, %v1042
        %v1075 = vadd.f32 %v1007, %v1043
        %v1076 = vadd.f32 %v1008, %v1044
        %v1077 = vadd.f32 %v1009, %v1045
        %v1078 = vadd.f32 %v1010, %v1046
        %v1079 = vadd.f32 %v1011, %v1047
        %v1080 = vadd.f32 %v1012, %v1048
        %v1081 = vadd.f32 %v1013, %v1049
        %v1082 = vadd.f32 %v1014, %v1050
        %v1083 = vadd.f32 %v1015, %v1051
        %v1084 = vadd.f32 %v1016, %v1052
        %v1085 = vadd.f32 %v1017, %v1053
        %v1086 = vadd.f32 %v1018, %v1054
        %v1087 = vadd.f32 %v1019, %v1055
        %v1088 = vpack.c.bf16 %v1057, %v1056
        %v1089 = vpack.c.bf16 %v1059, %v1058
        %v1090 = vpack.c.bf16 %v1061, %v1060
        %v1091 = vpack.c.bf16 %v1063, %v1062
        %v1092 = vpack.c.bf16 %v1065, %v1064
        %v1093 = vpack.c.bf16 %v1067, %v1066
        %v1094 = vpack.c.bf16 %v1069, %v1068
        %v1095 = vpack.c.bf16 %v1071, %v1070
        %v1096 = vpack.c.bf16 %v1073, %v1072
        %v1097 = vpack.c.bf16 %v1075, %v1074
        %v1098 = vpack.c.bf16 %v1077, %v1076
        %v1099 = vpack.c.bf16 %v1079, %v1078
        %v1100 = vpack.c.bf16 %v1081, %v1080
        %v1101 = vpack.c.bf16 %v1083, %v1082
        %v1102 = vpack.c.bf16 %v1085, %v1084
        %v1103 = vpack.c.bf16 %v1087, %v1086
        %v1120 = vunpack.c.l.b16 %v1088
        %v1121 = vunpack.c.h.b16 %v1088
        %v1122 = vunpack.c.l.b16 %v1089
        %v1123 = vunpack.c.h.b16 %v1089
        %v1124 = vunpack.c.l.b16 %v1090
        %v1125 = vunpack.c.h.b16 %v1090
        %v1126 = vunpack.c.l.b16 %v1091
        %v1127 = vunpack.c.h.b16 %v1091
        %v1128 = vunpack.c.l.b16 %v1092
        %v1129 = vunpack.c.h.b16 %v1092
        %v1130 = vunpack.c.l.b16 %v1093
        %v1131 = vunpack.c.h.b16 %v1093
        %v1132 = vunpack.c.l.b16 %v1094
        %v1133 = vunpack.c.h.b16 %v1094
        %v1134 = vunpack.c.l.b16 %v1095
        %v1135 = vunpack.c.h.b16 %v1095
        %v1136 = vunpack.c.l.b16 %v1096
        %v1137 = vunpack.c.h.b16 %v1096
        %v1138 = vunpack.c.l.b16 %v1097
        %v1139 = vunpack.c.h.b16 %v1097
        %v1140 = vunpack.c.l.b16 %v1098
        %v1141 = vunpack.c.h.b16 %v1098
        %v1142 = vunpack.c.l.b16 %v1099
        %v1143 = vunpack.c.h.b16 %v1099
        %v1144 = vunpack.c.l.b16 %v1100
        %v1145 = vunpack.c.h.b16 %v1100
        %v1146 = vunpack.c.l.b16 %v1101
        %v1147 = vunpack.c.h.b16 %v1101
        %v1148 = vunpack.c.l.b16 %v1102
        %v1149 = vunpack.c.h.b16 %v1102
        %v1150 = vunpack.c.l.b16 %v1103
        %v1151 = vunpack.c.h.b16 %v1103
        %v1152 = vpack.c.b16 %v1120, %v1120
        %v1153 = vpack.c.b16 %v1121, %v1121
        %v1154 = vpack.c.b16 %v1122, %v1122
        %v1155 = vpack.c.b16 %v1123, %v1123
        %v1156 = vpack.c.b16 %v1124, %v1124
        %v1157 = vpack.c.b16 %v1125, %v1125
        %v1158 = vpack.c.b16 %v1126, %v1126
        %v1159 = vpack.c.b16 %v1127, %v1127
        %v1160 = vpack.c.b16 %v1128, %v1128
        %v1161 = vpack.c.b16 %v1129, %v1129
        %v1162 = vpack.c.b16 %v1130, %v1130
        %v1163 = vpack.c.b16 %v1131, %v1131
        %v1164 = vpack.c.b16 %v1132, %v1132
        %v1165 = vpack.c.b16 %v1133, %v1133
        %v1166 = vpack.c.b16 %v1134, %v1134
        %v1167 = vpack.c.b16 %v1135, %v1135
        %v1168 = vpack.c.b16 %v1136, %v1136
        %v1169 = vpack.c.b16 %v1137, %v1137
        %v1170 = vpack.c.b16 %v1138, %v1138
        %v1171 = vpack.c.b16 %v1139, %v1139
        %v1172 = vpack.c.b16 %v1140, %v1140
        %v1173 = vpack.c.b16 %v1141, %v1141
        %v1174 = vpack.c.b16 %v1142, %v1142
        %v1175 = vpack.c.b16 %v1143, %v1143
        %v1176 = vpack.c.b16 %v1144, %v1144
        %v1177 = vpack.c.b16 %v1145, %v1145
        %v1178 = vpack.c.b16 %v1146, %v1146
        %v1179 = vpack.c.b16 %v1147, %v1147
        %v1180 = vpack.c.b16 %v1148, %v1148
        %v1181 = vpack.c.b16 %v1149, %v1149
        %v1182 = vpack.c.b16 %v1150, %v1150
        %v1183 = vpack.c.b16 %v1151, %v1151
        %1216 = vst [vmem:[%s203] sm:$0xf] %v1152
        %1217 = vst [vmem:[%s203 + $0x4] sm:$0xf] %v1153
        %1218 = vst [vmem:[%s203 + $0x8] sm:$0xf] %v1154
        %1219 = vst [vmem:[%s203 + $0xc] sm:$0xf] %v1155
        %1220 = vst [vmem:[%s203 + $0x10] sm:$0xf] %v1156
        %1221 = vst [vmem:[%s203 + $0x14] sm:$0xf] %v1157
        %1222 = vst [vmem:[%s203 + $0x18] sm:$0xf] %v1158
        %1223 = vst [vmem:[%s203 + $0x1c] sm:$0xf] %v1159
        %1224 = vst [vmem:[%s203 + $0x20] sm:$0xf] %v1160
        %1225 = vst [vmem:[%s203 + $0x24] sm:$0xf] %v1161
        %1226 = vst [vmem:[%s203 + $0x28] sm:$0xf] %v1162
        %1227 = vst [vmem:[%s203 + $0x2c] sm:$0xf] %v1163
        %1228 = vst [vmem:[%s203 + $0x30] sm:$0xf] %v1164
        %1229 = vst [vmem:[%s203 + $0x34] sm:$0xf] %v1165
        %1230 = vst [vmem:[%s203 + $0x38] sm:$0xf] %v1166
        %1231 = vst [vmem:[%s203 + $0x3c] sm:$0xf] %v1167
        %1232 = vst [vmem:[%s203 + $0x40] sm:$0xf] %v1168
        %1233 = vst [vmem:[%s203 + $0x44] sm:$0xf] %v1169
        %1234 = vst [vmem:[%s203 + $0x48] sm:$0xf] %v1170
        %1235 = vst [vmem:[%s203 + $0x4c] sm:$0xf] %v1171
        %1236 = vst [vmem:[%s203 + $0x50] sm:$0xf] %v1172
        %1237 = vst [vmem:[%s203 + $0x54] sm:$0xf] %v1173
        %1238 = vst [vmem:[%s203 + $0x58] sm:$0xf] %v1174
        %1239 = vst [vmem:[%s203 + $0x5c] sm:$0xf] %v1175
        %1240 = vst [vmem:[%s203 + $0x60] sm:$0xf] %v1176
        %1241 = vst [vmem:[%s203 + $0x64] sm:$0xf] %v1177
        %1242 = vst [vmem:[%s203 + $0x68] sm:$0xf] %v1178
        %1243 = vst [vmem:[%s203 + $0x6c] sm:$0xf] %v1179
        %1244 = vst [vmem:[%s203 + $0x70] sm:$0xf] %v1180
        %1245 = vst [vmem:[%s203 + $0x74] sm:$0xf] %v1181
        %1246 = vst [vmem:[%s203 + $0x78] sm:$0xf] %v1182
        %1247 = vst [vmem:[%s203 + $0x7c] sm:$0xf] %v1183
        %s1248 = sand.u32 %s97, 1
        %s1249 = scalar_lea.sflag [#allocation5], %s1248
        %s1250 = sand.u32 %s97, 1
        %s1251 = smul.addr %s1250, 128
        %s1252 = scalar_lea.vmem [#allocation8], %s1251
        // Predicated region
        $region45: #{tpu_custom_call.1} parent=31 // pred_check
          %p1253 = pneg %p107
        $region46: #{tpu_custom_call.1} parent=31 // pred_check_branch
          %1255 = sbr.rel (%p1253) target = $region48
        $region47: #{tpu_custom_call.1} parent=31 // pred_region
          %s1257 = ssub.s32 2048, 2048
          %1258 = vsyncadd %s1249, %s1257
          %s1259 = smul.addr %s21, 32
          %s1260 = smul.addr %s1259, 64
          %s1261 = scalar_lea.hbm %s3, %s1260
          %s1262 = sshll.u32 %s1252, 4
          %s1263 = int_to_ptr.vmem [resolvable:$true] %s1262
          %1268 = dma.vmem_to_hbm [thread:$0]  %s1263, 2048, %s1261, %s1249, 64, 64, 4
        $region48: #{tpu_custom_call.1} parent=31 // pred_fallthru
          _
      $region32: #{tpu_custom_call.1} parent=5 // pred_fallthru
        _
      %p1269 = scmp.le.s32.totalorder 2, %s16
      // Predicated region
      $region49: #{tpu_custom_call.1} parent=5 // pred_check
        %p1270 = pneg %p1269
      $region50: #{tpu_custom_call.1} parent=5 // pred_check_branch
        %1272 = sbr.rel (%p1270) target = $region52
      $region51: #{tpu_custom_call.1} parent=5 // pred_region
        %s1273 = ssub.s32 %s16, 2
        // Predicated region
        $region53: #{tpu_custom_call.1} parent=51 // pred_check
          %p1274 = pneg %p113
        $region54: #{tpu_custom_call.1} parent=51 // pred_check_branch
          %1276 = sbr.rel (%p1274) target = $region56
        $region55: #{tpu_custom_call.1} parent=51 // pred_region
          %s1277 = sand.u32 %s98, 1
          %s1278 = scalar_lea.sflag [#allocation5], %s1277
          %s1279 = sand.u32 %s98, 1
          %s1280 = smul.addr %s1279, 128
          %s1281 = scalar_lea.vmem [#allocation8], %s1280
          %1282 = dma.done %s1278, 2048
        $region56: #{tpu_custom_call.1} parent=51 // pred_fallthru
          _
      $region52: #{tpu_custom_call.1} parent=5 // pred_fallthru
        _
    $region6: #{tpu_custom_call.1} parent=1 // loop_footer
      %s20 = sadd.s32 1, %s16
    $region7: #{tpu_custom_call.1} parent=1 // loop_footer_branch
      %15 = sbr.rel target = $region3
    $region8: #{tpu_custom_call.1} parent=1 // loop_exit
      _
    %1283 = vsyncpa [#allocation4], 1
    %s1284 = scalar_lea.sflag [#allocation4], 1
    %1285 = vsyncpa %s1284, 1
    %1286 = vsyncpa [#allocation7], 1
    %1287 = vsyncpa [#allocation5], 1
    %s1288 = scalar_lea.sflag [#allocation5], 1
    %1289 = vsyncpa %s1288, 1

</llo_original>
